<compile_context>
chip_gen: v7x
topology: tpu7x:2x2x1
jax: 0.10.0
libtpu: 0.0.40
codegen_flags: <defaults>
</compile_context>

<pallas_src>
import functools
import math

import jax
import jax.numpy as jnp
from jax import lax
from jax.experimental import pallas as pl
from jax.experimental.pallas import tpu as pltpu

N_HEADS = 4
LN_EPS = 1e-5


# --------------------------------------------------------------------------
# In-kernel helpers (traced inside the fused kernel body)
# --------------------------------------------------------------------------

def _add_layernorm(x, y, g, b):
    """LayerNorm(x + y) over the last axis (fp32)."""
    z = x + y
    mean = jnp.mean(z, axis=-1, keepdims=True)
    var = jnp.mean(jnp.square(z - mean), axis=-1, keepdims=True)
    return (z - mean) * lax.rsqrt(var + LN_EPS) * g + b


def _mha(q, k, v, *, n_heads, causal):
    """Multi-head scaled-dot-product attention.

    q: [L, D] fp32, k/v: [S, D] fp32 -> [L, D] fp32.
    Heads are processed with a fully unrolled static-slice loop so everything
    stays in vregs/VMEM (no HBM round trips, no host-side head transposes).
    Matmul operands are bf16 (MXU fast path); masking / softmax stay fp32.
    """
    L, D = q.shape
    S = k.shape[0]
    E = D // n_heads
    scale = 1.0 / math.sqrt(E)

    # Fold the softmax scale into q once, cast operands to bf16 once.
    q16 = (q * scale).astype(jnp.bfloat16)
    k16 = k.astype(jnp.bfloat16)
    v16 = v.astype(jnp.bfloat16)

    if causal:
        row = lax.broadcasted_iota(jnp.int32, (L, S), 0)
        col = lax.broadcasted_iota(jnp.int32, (L, S), 1)
        keep = col <= row

    outs = []
    for h in range(n_heads):
        lo = h * E
        qh = q16[:, lo:lo + E]
        kh = k16[:, lo:lo + E]
        vh = v16[:, lo:lo + E]
        # scores = qh @ kh^T  (contract last dims directly, no explicit transpose)
        s = lax.dot_general(qh, kh, (((1,), (1,)), ((), ())),
                            preferred_element_type=jnp.float32)       # [L, S] f32
        if causal:
            s = jnp.where(keep, s, jnp.float32(-1e30))
        m = jnp.max(s, axis=-1, keepdims=True)
        p = jnp.exp(s - m)
        p = p * pl.reciprocal(jnp.sum(p, axis=-1, keepdims=True), approx=True)
        outs.append(jnp.dot(p.astype(jnp.bfloat16), vh,
                            preferred_element_type=jnp.float32))       # [L, E] f32
    return jnp.concatenate(outs, axis=-1)                              # [L, D] f32


# --------------------------------------------------------------------------
# Fused decoder-layer kernel (one batch element per grid step)
# --------------------------------------------------------------------------

def _decoder_layer_kernel(
        x_ref, cross_ref,
        sa_wqkv_ref, sa_bqkv_ref, sa_wo_ref, sa_bo_ref,
        ca_wq_ref, ca_bq_ref, ca_wkv_ref, ca_bkv_ref, ca_wo_ref, ca_bo_ref,
        ffn_w1_ref, ffn_b1_ref, ffn_w2_ref, ffn_b2_ref,
        ln1_g_ref, ln1_b_ref, ln2_g_ref, ln2_b_ref, ln3_g_ref, ln3_b_ref,
        o_ref, *, n_heads):
    D = x_ref.shape[-1]
    x = x_ref[0]           # [L, D] fp32
    cross = cross_ref[0]   # [S, D] fp32

    # ---- self attention (causal), x = norm1(x + SA(x)) --------------------
    qkv = jnp.dot(x.astype(jnp.bfloat16), sa_wqkv_ref[...],
                  preferred_element_type=jnp.float32) + sa_bqkv_ref[...]
    q, k, v = qkv[:, :D], qkv[:, D:2 * D], qkv[:, 2 * D:]
    attn = _mha(q, k, v, n_heads=n_heads, causal=True)
    sa = jnp.dot(attn.astype(jnp.bfloat16), sa_wo_ref[...],
                 preferred_element_type=jnp.float32) + sa_bo_ref[...]
    x = _add_layernorm(x, sa, ln1_g_ref[...], ln1_b_ref[...])

    # ---- cross attention, x = norm2(x + CA(x, cross)) ---------------------
    q = jnp.dot(x.astype(jnp.bfloat16), ca_wq_ref[...],
                preferred_element_type=jnp.float32) + ca_bq_ref[...]
    kv = jnp.dot(cross.astype(jnp.bfloat16), ca_wkv_ref[...],
                 preferred_element_type=jnp.float32) + ca_bkv_ref[...]
    k, v = kv[:, :D], kv[:, D:]
    attn = _mha(q, k, v, n_heads=n_heads, causal=False)
    ca = jnp.dot(attn.astype(jnp.bfloat16), ca_wo_ref[...],
                 preferred_element_type=jnp.float32) + ca_bo_ref[...]
    x = _add_layernorm(x, ca, ln2_g_ref[...], ln2_b_ref[...])

    # ---- FFN: y = conv2(relu(conv1(x))); out = norm3(x + y) ---------------
    # TODO(synk): dropout is identity (eval mode); training-mode dropout would
    # need pltpu.prng_seed / prng_random_bits.
    h = jnp.dot(x.astype(jnp.bfloat16), ffn_w1_ref[...],
                preferred_element_type=jnp.float32) + ffn_b1_ref[...]
    h = jnp.maximum(h, 0.0)
    y = jnp.dot(h.astype(jnp.bfloat16), ffn_w2_ref[...],
                preferred_element_type=jnp.float32) + ffn_b2_ref[...]
    o_ref[0] = _add_layernorm(x, y, ln3_g_ref[...], ln3_b_ref[...]
                              ).astype(o_ref.dtype)


# --------------------------------------------------------------------------
# Host-side wrapper
# --------------------------------------------------------------------------

_WEIGHT_ORDER = (
    "sa_wqkv", "sa_bqkv", "sa_wo", "sa_bo",
    "ca_wq", "ca_bq", "ca_wkv", "ca_bkv", "ca_wo", "ca_bo",
    "ffn_w1", "ffn_b1", "ffn_w2", "ffn_b2",
    "ln1_g", "ln1_b", "ln2_g", "ln2_b", "ln3_g", "ln3_b",
)


def pack_decoder_params(params):
    """One-time packing: fuse QKV / KV weights, cast weights to bf16 (fp32
    accumulation in-kernel), keep biases and LayerNorm params fp32 as 2-D
    [1, N] rows (broadcast-friendly layout)."""
    sa, ca = params["self_attn"], params["cross_attn"]
    bf16, f32 = jnp.bfloat16, jnp.float32
    cat = lambda ws: jnp.concatenate(ws, axis=-1)
    return {
        "sa_wqkv": cat([sa["wq"], sa["wk"], sa["wv"]]).astype(bf16),
        "sa_bqkv": cat([sa["bq"], sa["bk"], sa["bv"]])[None, :].astype(f32),
        "sa_wo": sa["wo"].astype(bf16),
        "sa_bo": sa["bo"][None, :].astype(f32),
        "ca_wq": ca["wq"].astype(bf16),
        "ca_bq": ca["bq"][None, :].astype(f32),
        "ca_wkv": cat([ca["wk"], ca["wv"]]).astype(bf16),
        "ca_bkv": cat([ca["bk"], ca["bv"]])[None, :].astype(f32),
        "ca_wo": ca["wo"].astype(bf16),
        "ca_bo": ca["bo"][None, :].astype(f32),
        "ffn_w1": params["conv1_w"].astype(bf16),
        "ffn_b1": params["conv1_b"][None, :].astype(f32),
        "ffn_w2": params["conv2_w"].astype(bf16),
        "ffn_b2": params["conv2_b"][None, :].astype(f32),
        "ln1_g": params["norm1_g"][None, :].astype(f32),
        "ln1_b": params["norm1_b"][None, :].astype(f32),
        "ln2_g": params["norm2_g"][None, :].astype(f32),
        "ln2_b": params["norm2_b"][None, :].astype(f32),
        "ln3_g": params["norm3_g"][None, :].astype(f32),
        "ln3_b": params["norm3_b"][None, :].astype(f32),
    }


def decoder_layer(x, cross, packed, *, n_heads=N_HEADS):
    """Forward pass of DecoderLayer (dropout = identity / eval mode).

    x: [B, L, D], cross: [B, S, D]  ->  [B, L, D]
    """
    B, L, D = x.shape
    S = cross.shape[1]
    assert D % n_heads == 0, "d_model must be divisible by n_heads"
    d_ff = packed["ffn_w1"].shape[1]
    weights = [packed[name] for name in _WEIGHT_ORDER]

    def resident_spec(arr):
        # Whole array, same block index for every grid step -> DMA'd once and
        # kept resident in VMEM across the (parallel) batch grid.
        zeros = (0,) * arr.ndim
        return pl.BlockSpec(arr.shape, lambda b, z=zeros: z)

    in_specs = ([pl.BlockSpec((1, L, D), lambda b: (b, 0, 0)),
                 pl.BlockSpec((1, S, D), lambda b: (b, 0, 0))]
                + [resident_spec(w) for w in weights])

    # Advisory cost estimate for the XLA scheduler.
    H, E = n_heads, D // n_heads
    mm_flops = (2 * B * L * D * 3 * D        # self-attn fused QKV projection
                + 2 * B * L * D * D          # self-attn output projection
                + 2 * B * L * D * D          # cross-attn Q projection
                + 2 * B * S * D * 2 * D      # cross-attn fused KV projection
                + 2 * B * L * D * D          # cross-attn output projection
                + 2 * 2 * B * L * D * d_ff)  # FFN (two matmuls)
    attn_flops = 2 * B * H * E * (2 * L * L + 2 * L * S)
    transcendentals = B * H * (L * L + L * S)
    bytes_accessed = int((x.size + cross.size + B * L * D) * 4
                         + sum(int(w.size) * w.dtype.itemsize for w in weights))

    kern = functools.partial(_decoder_layer_kernel, n_heads=n_heads)
    return pl.pallas_call(
        kern,
        out_shape=jax.ShapeDtypeStruct((B, L, D), jnp.float32),
        grid=(B,),
        in_specs=in_specs,
        out_specs=pl.BlockSpec((1, L, D), lambda b: (b, 0, 0)),
        compiler_params=pltpu.CompilerParams(
            dimension_semantics=("parallel",)),
        cost_estimate=pl.CostEstimate(flops=int(mm_flops + attn_flops),
                                      transcendentals=int(transcendentals),
                                      bytes_accessed=bytes_accessed),
    )(x, cross, *weights)


# --------------------------------------------------------------------------
# Pure-JAX fp32 reference (same math, no Pallas) — used for a loose sanity check
# --------------------------------------------------------------------------

def _ref_mha(q, k, v, *, n_heads, causal):
    L, D = q.shape
    S = k.shape[0]
    E = D // n_heads
    scale = 1.0 / math.sqrt(E)
    qh = q.reshape(L, n_heads, E).transpose(1, 0, 2)
    kh = k.reshape(S, n_heads, E).transpose(1, 0, 2)
    vh = v.reshape(S, n_heads, E).transpose(1, 0, 2)
    s = jnp.einsum("hle,hse->hls", qh, kh) * scale
    if causal:
        mask = jnp.tril(jnp.ones((L, S), bool))
        s = jnp.where(mask[None], s, -1e30)
    p = jax.nn.softmax(s, axis=-1)
    o = jnp.einsum("hls,hse->hle", p, vh)
    return o.transpose(1, 0, 2).reshape(L, D)


def decoder_layer_reference(x, cross, params, *, n_heads=N_HEADS):
    sa, ca = params["self_attn"], params["cross_attn"]

    def ln(z, g, b):
        m = jnp.mean(z, -1, keepdims=True)
        v = jnp.mean(jnp.square(z - m), -1, keepdims=True)
        return (z - m) * lax.rsqrt(v + LN_EPS) * g + b

    def one(xb, cb):
        q = xb @ sa["wq"] + sa["bq"]
        k = xb @ sa["wk"] + sa["bk"]
        v = xb @ sa["wv"] + sa["bv"]
        a = _ref_mha(q, k, v, n_heads=n_heads, causal=True) @ sa["wo"] + sa["bo"]
        xb = ln(xb + a, params["norm1_g"], params["norm1_b"])
        q = xb @ ca["wq"] + ca["bq"]
        k = cb @ ca["wk"] + ca["bk"]
        v = cb @ ca["wv"] + ca["bv"]
        a = _ref_mha(q, k, v, n_heads=n_heads, causal=False) @ ca["wo"] + ca["bo"]
        xb = ln(xb + a, params["norm2_g"], params["norm2_b"])
        h = jnp.maximum(xb @ params["conv1_w"] + params["conv1_b"], 0.0)
        y = h @ params["conv2_w"] + params["conv2_b"]
        return ln(xb + y, params["norm3_g"], params["norm3_b"])

    return jax.vmap(one)(x, cross)


# --------------------------------------------------------------------------
# Deterministic parameter construction (PyTorch-equivalent layout)
# --------------------------------------------------------------------------

def make_attn_params(key, d_model):
    ks = jax.random.split(key, 8)
    s = 1.0 / (d_model ** 0.5)
    return {
        "wq": jax.random.normal(ks[0], (d_model, d_model), jnp.float32) * s,
        "bq": jax.random.normal(ks[1], (d_model,), jnp.float32) * 0.01,
        "wk": jax.random.normal(ks[2], (d_model, d_model), jnp.float32) * s,
        "bk": jax.random.normal(ks[3], (d_model,), jnp.float32) * 0.01,
        "wv": jax.random.normal(ks[4], (d_model, d_model), jnp.float32) * s,
        "bv": jax.random.normal(ks[5], (d_model,), jnp.float32) * 0.01,
        "wo": jax.random.normal(ks[6], (d_model, d_model), jnp.float32) * s,
        "bo": jax.random.normal(ks[7], (d_model,), jnp.float32) * 0.01,
    }


def make_params(key, d_model, d_ff):
    k_self, k_cross, k1, k2, k3, k4 = jax.random.split(key, 6)
    return {
        "self_attn": make_attn_params(k_self, d_model),
        "cross_attn": make_attn_params(k_cross, d_model),
        # Conv1d weights [out_ch, in_ch, 1] stored transposed as [in_ch, out_ch]
        "conv1_w": jax.random.normal(k1, (d_model, d_ff), jnp.float32)
                   / (d_model ** 0.5),
        "conv1_b": jax.random.normal(k2, (d_ff,), jnp.float32) * 0.01,
        "conv2_w": jax.random.normal(k3, (d_ff, d_model), jnp.float32)
                   / (d_ff ** 0.5),
        "conv2_b": jax.random.normal(k4, (d_model,), jnp.float32) * 0.01,
        # LayerNorm: PyTorch default init (gamma=1, beta=0)
        "norm1_g": jnp.ones((d_model,), jnp.float32),
        "norm1_b": jnp.zeros((d_model,), jnp.float32),
        "norm2_g": jnp.ones((d_model,), jnp.float32),
        "norm2_b": jnp.zeros((d_model,), jnp.float32),
        "norm3_g": jnp.ones((d_model,), jnp.float32),
        "norm3_b": jnp.zeros((d_model,), jnp.float32),
    }


# --------------------------------------------------------------------------

if __name__ == "__main__":
    B, L, S = 2, 8, 12            # batch, target seq, cross (memory) seq
    D_MODEL = 32
    D_FF = 4 * D_MODEL

    key = jax.random.PRNGKey(0)
    k_params, k_x, k_cross = jax.random.split(key, 3)

    params = make_params(k_params, D_MODEL, D_FF)
    packed = pack_decoder_params(params)
    x = jax.random.normal(k_x, (B, L, D_MODEL), jnp.float32)
    cross = jax.random.normal(k_cross, (B, S, D_MODEL), jnp.float32)

    out = decoder_layer(x, cross, packed)
    out = jax.block_until_ready(out)
    assert out.shape == (B, L, D_MODEL)
    assert bool(jnp.all(jnp.isfinite(out)))

    # Loose sanity check vs. a pure-JAX fp32 reference (kernel uses bf16 matmul
    # operands, so only coarse agreement is expected).
    ref = jax.block_until_ready(decoder_layer_reference(x, cross, params))
    max_err = float(jnp.max(jnp.abs(out - ref)))
    assert max_err < 0.25, f"kernel/reference mismatch: max abs err {max_err}"

    print("KERNEL_OK")
</pallas_src>

<mosaic_0001>
module attributes {stable_mosaic.version = 11 : i64} {
  func.func @_decoder_layer_kernel(%arg0: i32, %arg1: memref<1x8x32xf32, #tpu.memory_space<vmem>>, %arg2: memref<1x12x32xf32, #tpu.memory_space<vmem>>, %arg3: memref<32x96xbf16, #tpu.memory_space<vmem>>, %arg4: memref<1x96xf32, #tpu.memory_space<vmem>>, %arg5: memref<32x32xbf16, #tpu.memory_space<vmem>>, %arg6: memref<1x32xf32, #tpu.memory_space<vmem>>, %arg7: memref<32x32xbf16, #tpu.memory_space<vmem>>, %arg8: memref<1x32xf32, #tpu.memory_space<vmem>>, %arg9: memref<32x64xbf16, #tpu.memory_space<vmem>>, %arg10: memref<1x64xf32, #tpu.memory_space<vmem>>, %arg11: memref<32x32xbf16, #tpu.memory_space<vmem>>, %arg12: memref<1x32xf32, #tpu.memory_space<vmem>>, %arg13: memref<32x128xbf16, #tpu.memory_space<vmem>>, %arg14: memref<1x128xf32, #tpu.memory_space<vmem>>, %arg15: memref<128x32xbf16, #tpu.memory_space<vmem>>, %arg16: memref<1x32xf32, #tpu.memory_space<vmem>>, %arg17: memref<1x32xf32, #tpu.memory_space<vmem>>, %arg18: memref<1x32xf32, #tpu.memory_space<vmem>>, %arg19: memref<1x32xf32, #tpu.memory_space<vmem>>, %arg20: memref<1x32xf32, #tpu.memory_space<vmem>>, %arg21: memref<1x32xf32, #tpu.memory_space<vmem>>, %arg22: memref<1x32xf32, #tpu.memory_space<vmem>>, %arg23: memref<1x8x32xf32, #tpu.memory_space<vmem>>) attributes {dimension_semantics = [#tpu.dimension_semantics<parallel>], iteration_bounds = array<i64: 2>, scalar_prefetch = 0 : i64, scratch_operands = 0 : i64, tpu.core_type = #tpu.core_type<tc>, window_params = [{transform_indices = @transform_0, window_bounds = array<i64: 1, 8, 32>}, {transform_indices = @transform_1, window_bounds = array<i64: 1, 12, 32>}, {pipeline_mode = #tpu.pipeline_mode<synchronous>, transform_indices = @transform_2, window_bounds = array<i64: 32, 96>}, {pipeline_mode = #tpu.pipeline_mode<synchronous>, transform_indices = @transform_3, window_bounds = array<i64: 1, 96>}, {pipeline_mode = #tpu.pipeline_mode<synchronous>, transform_indices = @transform_4, window_bounds = array<i64: 32, 32>}, {pipeline_mode = #tpu.pipeline_mode<synchronous>, transform_indices = @transform_5, window_bounds = array<i64: 1, 32>}, {pipeline_mode = #tpu.pipeline_mode<synchronous>, transform_indices = @transform_6, window_bounds = array<i64: 32, 32>}, {pipeline_mode = #tpu.pipeline_mode<synchronous>, transform_indices = @transform_7, window_bounds = array<i64: 1, 32>}, {pipeline_mode = #tpu.pipeline_mode<synchronous>, transform_indices = @transform_8, window_bounds = array<i64: 32, 64>}, {pipeline_mode = #tpu.pipeline_mode<synchronous>, transform_indices = @transform_9, window_bounds = array<i64: 1, 64>}, {pipeline_mode = #tpu.pipeline_mode<synchronous>, transform_indices = @transform_10, window_bounds = array<i64: 32, 32>}, {pipeline_mode = #tpu.pipeline_mode<synchronous>, transform_indices = @transform_11, window_bounds = array<i64: 1, 32>}, {pipeline_mode = #tpu.pipeline_mode<synchronous>, transform_indices = @transform_12, window_bounds = array<i64: 32, 128>}, {pipeline_mode = #tpu.pipeline_mode<synchronous>, transform_indices = @transform_13, window_bounds = array<i64: 1, 128>}, {pipeline_mode = #tpu.pipeline_mode<synchronous>, transform_indices = @transform_14, window_bounds = array<i64: 128, 32>}, {pipeline_mode = #tpu.pipeline_mode<synchronous>, transform_indices = @transform_15, window_bounds = array<i64: 1, 32>}, {pipeline_mode = #tpu.pipeline_mode<synchronous>, transform_indices = @transform_16, window_bounds = array<i64: 1, 32>}, {pipeline_mode = #tpu.pipeline_mode<synchronous>, transform_indices = @transform_17, window_bounds = array<i64: 1, 32>}, {pipeline_mode = #tpu.pipeline_mode<synchronous>, transform_indices = @transform_18, window_bounds = array<i64: 1, 32>}, {pipeline_mode = #tpu.pipeline_mode<synchronous>, transform_indices = @transform_19, window_bounds = array<i64: 1, 32>}, {pipeline_mode = #tpu.pipeline_mode<synchronous>, transform_indices = @transform_20, window_bounds = array<i64: 1, 32>}, {pipeline_mode = #tpu.pipeline_mode<synchronous>, transform_indices = @transform_21, window_bounds = array<i64: 1, 32>}, {transform_indices = @transform_22, window_bounds = array<i64: 1, 8, 32>}]} {
    %c0 = arith.constant 0 : index
    %c0_0 = arith.constant 0 : index
    %c0_1 = arith.constant 0 : index
    %0 = vector.load %arg1[%c0, %c0_0, %c0_1] : memref<1x8x32xf32, #tpu.memory_space<vmem>>, vector<1x8x32xf32>
    %1 = vector.shape_cast %0 : vector<1x8x32xf32> to vector<8x32xf32>
    %c0_2 = arith.constant 0 : index
    %c0_3 = arith.constant 0 : index
    %c0_4 = arith.constant 0 : index
    %2 = vector.load %arg2[%c0_2, %c0_3, %c0_4] : memref<1x12x32xf32, #tpu.memory_space<vmem>>, vector<1x12x32xf32>
    %3 = vector.shape_cast %2 : vector<1x12x32xf32> to vector<12x32xf32>
    %4 = arith.truncf %1 : vector<8x32xf32> to vector<8x32xbf16>
    %c0_5 = arith.constant 0 : index
    %c0_6 = arith.constant 0 : index
    %5 = vector.load %arg3[%c0_5, %c0_6] : memref<32x96xbf16, #tpu.memory_space<vmem>>, vector<32x96xbf16>
    %cst = arith.constant dense<0.000000e+00> : vector<8x96xf32>
    %6 = tpu.matmul %4, %5, %cst {dimension_numbers = #tpu.dot_dimension_numbers<[1], [0], [0], [1], [0, 0, 1, 1], [], []>} : vector<8x32xbf16>, vector<32x96xbf16>, vector<8x96xf32> -> vector<8x96xf32>
    %c0_7 = arith.constant 0 : index
    %c0_8 = arith.constant 0 : index
    %7 = vector.load %arg4[%c0_7, %c0_8] : memref<1x96xf32, #tpu.memory_space<vmem>>, vector<1x96xf32>
    %8 = vector.broadcast %7 : vector<1x96xf32> to vector<8x96xf32>
    %9 = arith.addf %6, %8 : vector<8x96xf32>
    %10 = vector.extract_strided_slice %9 {offsets = [0, 0], sizes = [8, 32], strides = [1, 1]} : vector<8x96xf32> to vector<8x32xf32>
    %11 = vector.extract_strided_slice %9 {offsets = [0, 32], sizes = [8, 32], strides = [1, 1]} : vector<8x96xf32> to vector<8x32xf32>
    %12 = vector.extract_strided_slice %9 {offsets = [0, 64], sizes = [8, 32], strides = [1, 1]} : vector<8x96xf32> to vector<8x32xf32>
    %cst_9 = arith.constant 0.353553385 : f32
    %13 = vector.broadcast %cst_9 : f32 to vector<8x32xf32>
    %14 = arith.mulf %10, %13 : vector<8x32xf32>
    %15 = arith.truncf %14 : vector<8x32xf32> to vector<8x32xbf16>
    %16 = arith.truncf %11 : vector<8x32xf32> to vector<8x32xbf16>
    %17 = arith.truncf %12 : vector<8x32xf32> to vector<8x32xbf16>
    %18 = tpu.iota {dimensions = array<i32: 0>} : vector<8x8xi32>
    %19 = tpu.iota {dimensions = array<i32: 1>} : vector<8x8xi32>
    %20 = arith.cmpi sle, %19, %18 : vector<8x8xi32>
    %21 = vector.extract_strided_slice %15 {offsets = [0, 0], sizes = [8, 8], strides = [1, 1]} : vector<8x32xbf16> to vector<8x8xbf16>
    %22 = vector.extract_strided_slice %16 {offsets = [0, 0], sizes = [8, 8], strides = [1, 1]} : vector<8x32xbf16> to vector<8x8xbf16>
    %23 = vector.extract_strided_slice %17 {offsets = [0, 0], sizes = [8, 8], strides = [1, 1]} : vector<8x32xbf16> to vector<8x8xbf16>
    %cst_10 = arith.constant dense<0.000000e+00> : vector<8x8xf32>
    %24 = tpu.matmul %21, %22, %cst_10 {dimension_numbers = #tpu.dot_dimension_numbers<[1], [1], [0], [0], [0, 0, 1, 0], [], []>} : vector<8x8xbf16>, vector<8x8xbf16>, vector<8x8xf32> -> vector<8x8xf32>
    %cst_11 = arith.constant -1.000000e+30 : f32
    %25 = vector.broadcast %cst_11 : f32 to vector<8x8xf32>
    %26 = arith.select %20, %24, %25 : vector<8x8xi1>, vector<8x8xf32>
    %cst_12 = arith.constant dense<0xFF800000> : vector<8xf32>
    %27 = vector.multi_reduction <maximumf>, %26, %cst_12 [1] : vector<8x8xf32> to vector<8xf32>
    %28 = vector.shape_cast %27 : vector<8xf32> to vector<8x1xf32>
    %29 = vector.broadcast %28 : vector<8x1xf32> to vector<8x8xf32>
    %30 = arith.subf %26, %29 : vector<8x8xf32>
    %31 = math.exp %30 : vector<8x8xf32>
    %cst_13 = arith.constant dense<0.000000e+00> : vector<8xf32>
    %32 = vector.multi_reduction <add>, %31, %cst_13 [1] : vector<8x8xf32> to vector<8xf32>
    %33 = vector.shape_cast %32 : vector<8xf32> to vector<8x1xf32>
    %34 = tpu.reciprocal %33 {approx = true} : vector<8x1xf32> -> vector<8x1xf32>
    %35 = vector.broadcast %34 : vector<8x1xf32> to vector<8x8xf32>
    %36 = arith.mulf %31, %35 : vector<8x8xf32>
    %37 = arith.truncf %36 : vector<8x8xf32> to vector<8x8xbf16>
    %cst_14 = arith.constant dense<0.000000e+00> : vector<8x8xf32>
    %38 = tpu.matmul %37, %23, %cst_14 {dimension_numbers = #tpu.dot_dimension_numbers<[1], [0], [0], [1], [0, 0, 1, 1], [], []>} : vector<8x8xbf16>, vector<8x8xbf16>, vector<8x8xf32> -> vector<8x8xf32>
    %39 = vector.extract_strided_slice %15 {offsets = [0, 8], sizes = [8, 8], strides = [1, 1]} : vector<8x32xbf16> to vector<8x8xbf16>
    %40 = vector.extract_strided_slice %16 {offsets = [0, 8], sizes = [8, 8], strides = [1, 1]} : vector<8x32xbf16> to vector<8x8xbf16>
    %41 = vector.extract_strided_slice %17 {offsets = [0, 8], sizes = [8, 8], strides = [1, 1]} : vector<8x32xbf16> to vector<8x8xbf16>
    %cst_15 = arith.constant dense<0.000000e+00> : vector<8x8xf32>
    %42 = tpu.matmul %39, %40, %cst_15 {dimension_numbers = #tpu.dot_dimension_numbers<[1], [1], [0], [0], [0, 0, 1, 0], [], []>} : vector<8x8xbf16>, vector<8x8xbf16>, vector<8x8xf32> -> vector<8x8xf32>
    %cst_16 = arith.constant -1.000000e+30 : f32
    %43 = vector.broadcast %cst_16 : f32 to vector<8x8xf32>
    %44 = arith.select %20, %42, %43 : vector<8x8xi1>, vector<8x8xf32>
    %cst_17 = arith.constant dense<0xFF800000> : vector<8xf32>
    %45 = vector.multi_reduction <maximumf>, %44, %cst_17 [1] : vector<8x8xf32> to vector<8xf32>
    %46 = vector.shape_cast %45 : vector<8xf32> to vector<8x1xf32>
    %47 = vector.broadcast %46 : vector<8x1xf32> to vector<8x8xf32>
    %48 = arith.subf %44, %47 : vector<8x8xf32>
    %49 = math.exp %48 : vector<8x8xf32>
    %cst_18 = arith.constant dense<0.000000e+00> : vector<8xf32>
    %50 = vector.multi_reduction <add>, %49, %cst_18 [1] : vector<8x8xf32> to vector<8xf32>
    %51 = vector.shape_cast %50 : vector<8xf32> to vector<8x1xf32>
    %52 = tpu.reciprocal %51 {approx = true} : vector<8x1xf32> -> vector<8x1xf32>
    %53 = vector.broadcast %52 : vector<8x1xf32> to vector<8x8xf32>
    %54 = arith.mulf %49, %53 : vector<8x8xf32>
    %55 = arith.truncf %54 : vector<8x8xf32> to vector<8x8xbf16>
    %cst_19 = arith.constant dense<0.000000e+00> : vector<8x8xf32>
    %56 = tpu.matmul %55, %41, %cst_19 {dimension_numbers = #tpu.dot_dimension_numbers<[1], [0], [0], [1], [0, 0, 1, 1], [], []>} : vector<8x8xbf16>, vector<8x8xbf16>, vector<8x8xf32> -> vector<8x8xf32>
    %57 = vector.extract_strided_slice %15 {offsets = [0, 16], sizes = [8, 8], strides = [1, 1]} : vector<8x32xbf16> to vector<8x8xbf16>
    %58 = vector.extract_strided_slice %16 {offsets = [0, 16], sizes = [8, 8], strides = [1, 1]} : vector<8x32xbf16> to vector<8x8xbf16>
    %59 = vector.extract_strided_slice %17 {offsets = [0, 16], sizes = [8, 8], strides = [1, 1]} : vector<8x32xbf16> to vector<8x8xbf16>
    %cst_20 = arith.constant dense<0.000000e+00> : vector<8x8xf32>
    %60 = tpu.matmul %57, %58, %cst_20 {dimension_numbers = #tpu.dot_dimension_numbers<[1], [1], [0], [0], [0, 0, 1, 0], [], []>} : vector<8x8xbf16>, vector<8x8xbf16>, vector<8x8xf32> -> vector<8x8xf32>
    %cst_21 = arith.constant -1.000000e+30 : f32
    %61 = vector.broadcast %cst_21 : f32 to vector<8x8xf32>
    %62 = arith.select %20, %60, %61 : vector<8x8xi1>, vector<8x8xf32>
    %cst_22 = arith.constant dense<0xFF800000> : vector<8xf32>
    %63 = vector.multi_reduction <maximumf>, %62, %cst_22 [1] : vector<8x8xf32> to vector<8xf32>
    %64 = vector.shape_cast %63 : vector<8xf32> to vector<8x1xf32>
    %65 = vector.broadcast %64 : vector<8x1xf32> to vector<8x8xf32>
    %66 = arith.subf %62, %65 : vector<8x8xf32>
    %67 = math.exp %66 : vector<8x8xf32>
    %cst_23 = arith.constant dense<0.000000e+00> : vector<8xf32>
    %68 = vector.multi_reduction <add>, %67, %cst_23 [1] : vector<8x8xf32> to vector<8xf32>
    %69 = vector.shape_cast %68 : vector<8xf32> to vector<8x1xf32>
    %70 = tpu.reciprocal %69 {approx = true} : vector<8x1xf32> -> vector<8x1xf32>
    %71 = vector.broadcast %70 : vector<8x1xf32> to vector<8x8xf32>
    %72 = arith.mulf %67, %71 : vector<8x8xf32>
    %73 = arith.truncf %72 : vector<8x8xf32> to vector<8x8xbf16>
    %cst_24 = arith.constant dense<0.000000e+00> : vector<8x8xf32>
    %74 = tpu.matmul %73, %59, %cst_24 {dimension_numbers = #tpu.dot_dimension_numbers<[1], [0], [0], [1], [0, 0, 1, 1], [], []>} : vector<8x8xbf16>, vector<8x8xbf16>, vector<8x8xf32> -> vector<8x8xf32>
    %75 = vector.extract_strided_slice %15 {offsets = [0, 24], sizes = [8, 8], strides = [1, 1]} : vector<8x32xbf16> to vector<8x8xbf16>
    %76 = vector.extract_strided_slice %16 {offsets = [0, 24], sizes = [8, 8], strides = [1, 1]} : vector<8x32xbf16> to vector<8x8xbf16>
    %77 = vector.extract_strided_slice %17 {offsets = [0, 24], sizes = [8, 8], strides = [1, 1]} : vector<8x32xbf16> to vector<8x8xbf16>
    %cst_25 = arith.constant dense<0.000000e+00> : vector<8x8xf32>
    %78 = tpu.matmul %75, %76, %cst_25 {dimension_numbers = #tpu.dot_dimension_numbers<[1], [1], [0], [0], [0, 0, 1, 0], [], []>} : vector<8x8xbf16>, vector<8x8xbf16>, vector<8x8xf32> -> vector<8x8xf32>
    %cst_26 = arith.constant -1.000000e+30 : f32
    %79 = vector.broadcast %cst_26 : f32 to vector<8x8xf32>
    %80 = arith.select %20, %78, %79 : vector<8x8xi1>, vector<8x8xf32>
    %cst_27 = arith.constant dense<0xFF800000> : vector<8xf32>
    %81 = vector.multi_reduction <maximumf>, %80, %cst_27 [1] : vector<8x8xf32> to vector<8xf32>
    %82 = vector.shape_cast %81 : vector<8xf32> to vector<8x1xf32>
    %83 = vector.broadcast %82 : vector<8x1xf32> to vector<8x8xf32>
    %84 = arith.subf %80, %83 : vector<8x8xf32>
    %85 = math.exp %84 : vector<8x8xf32>
    %cst_28 = arith.constant dense<0.000000e+00> : vector<8xf32>
    %86 = vector.multi_reduction <add>, %85, %cst_28 [1] : vector<8x8xf32> to vector<8xf32>
    %87 = vector.shape_cast %86 : vector<8xf32> to vector<8x1xf32>
    %88 = tpu.reciprocal %87 {approx = true} : vector<8x1xf32> -> vector<8x1xf32>
    %89 = vector.broadcast %88 : vector<8x1xf32> to vector<8x8xf32>
    %90 = arith.mulf %85, %89 : vector<8x8xf32>
    %91 = arith.truncf %90 : vector<8x8xf32> to vector<8x8xbf16>
    %cst_29 = arith.constant dense<0.000000e+00> : vector<8x8xf32>
    %92 = tpu.matmul %91, %77, %cst_29 {dimension_numbers = #tpu.dot_dimension_numbers<[1], [0], [0], [1], [0, 0, 1, 1], [], []>} : vector<8x8xbf16>, vector<8x8xbf16>, vector<8x8xf32> -> vector<8x8xf32>
    %93 = tpu.concatenate %38, %56, %74, %92 in 1 : vector<8x8xf32>, vector<8x8xf32>, vector<8x8xf32>, vector<8x8xf32> -> vector<8x32xf32>
    %94 = arith.truncf %93 : vector<8x32xf32> to vector<8x32xbf16>
    %c0_30 = arith.constant 0 : index
    %c0_31 = arith.constant 0 : index
    %95 = vector.load %arg5[%c0_30, %c0_31] : memref<32x32xbf16, #tpu.memory_space<vmem>>, vector<32x32xbf16>
    %cst_32 = arith.constant dense<0.000000e+00> : vector<8x32xf32>
    %96 = tpu.matmul %94, %95, %cst_32 {dimension_numbers = #tpu.dot_dimension_numbers<[1], [0], [0], [1], [0, 0, 1, 1], [], []>} : vector<8x32xbf16>, vector<32x32xbf16>, vector<8x32xf32> -> vector<8x32xf32>
    %c0_33 = arith.constant 0 : index
    %c0_34 = arith.constant 0 : index
    %97 = vector.load %arg6[%c0_33, %c0_34] : memref<1x32xf32, #tpu.memory_space<vmem>>, vector<1x32xf32>
    %98 = vector.broadcast %97 : vector<1x32xf32> to vector<8x32xf32>
    %99 = arith.addf %96, %98 : vector<8x32xf32>
    %c0_35 = arith.constant 0 : index
    %c0_36 = arith.constant 0 : index
    %100 = vector.load %arg17[%c0_35, %c0_36] : memref<1x32xf32, #tpu.memory_space<vmem>>, vector<1x32xf32>
    %c0_37 = arith.constant 0 : index
    %c0_38 = arith.constant 0 : index
    %101 = vector.load %arg18[%c0_37, %c0_38] : memref<1x32xf32, #tpu.memory_space<vmem>>, vector<1x32xf32>
    %102 = arith.addf %1, %99 : vector<8x32xf32>
    %cst_39 = arith.constant dense<0.000000e+00> : vector<8xf32>
    %103 = vector.multi_reduction <add>, %102, %cst_39 [1] : vector<8x32xf32> to vector<8xf32>
    %104 = vector.shape_cast %103 : vector<8xf32> to vector<8x1xf32>
    %cst_40 = arith.constant 3.200000e+01 : f32
    %105 = vector.broadcast %cst_40 : f32 to vector<8x1xf32>
    %106 = arith.divf %104, %105 : vector<8x1xf32>
    %107 = vector.broadcast %106 : vector<8x1xf32> to vector<8x32xf32>
    %108 = arith.subf %102, %107 : vector<8x32xf32>
    %109 = arith.mulf %108, %108 : vector<8x32xf32>
    %cst_41 = arith.constant dense<0.000000e+00> : vector<8xf32>
    %110 = vector.multi_reduction <add>, %109, %cst_41 [1] : vector<8x32xf32> to vector<8xf32>
    %111 = vector.shape_cast %110 : vector<8xf32> to vector<8x1xf32>
    %cst_42 = arith.constant 3.200000e+01 : f32
    %112 = vector.broadcast %cst_42 : f32 to vector<8x1xf32>
    %113 = arith.divf %111, %112 : vector<8x1xf32>
    %114 = vector.broadcast %106 : vector<8x1xf32> to vector<8x32xf32>
    %115 = arith.subf %102, %114 : vector<8x32xf32>
    %cst_43 = arith.constant 9.99999974E-6 : f32
    %116 = vector.broadcast %cst_43 : f32 to vector<8x1xf32>
    %117 = arith.addf %113, %116 : vector<8x1xf32>
    %118 = math.rsqrt %117 : vector<8x1xf32>
    %119 = vector.broadcast %118 : vector<8x1xf32> to vector<8x32xf32>
    %120 = arith.mulf %115, %119 : vector<8x32xf32>
    %121 = vector.broadcast %100 : vector<1x32xf32> to vector<8x32xf32>
    %122 = arith.mulf %120, %121 : vector<8x32xf32>
    %123 = vector.broadcast %101 : vector<1x32xf32> to vector<8x32xf32>
    %124 = arith.addf %122, %123 : vector<8x32xf32>
    %125 = arith.truncf %124 : vector<8x32xf32> to vector<8x32xbf16>
    %c0_44 = arith.constant 0 : index
    %c0_45 = arith.constant 0 : index
    %126 = vector.load %arg7[%c0_44, %c0_45] : memref<32x32xbf16, #tpu.memory_space<vmem>>, vector<32x32xbf16>
    %cst_46 = arith.constant dense<0.000000e+00> : vector<8x32xf32>
    %127 = tpu.matmul %125, %126, %cst_46 {dimension_numbers = #tpu.dot_dimension_numbers<[1], [0], [0], [1], [0, 0, 1, 1], [], []>} : vector<8x32xbf16>, vector<32x32xbf16>, vector<8x32xf32> -> vector<8x32xf32>
    %c0_47 = arith.constant 0 : index
    %c0_48 = arith.constant 0 : index
    %128 = vector.load %arg8[%c0_47, %c0_48] : memref<1x32xf32, #tpu.memory_space<vmem>>, vector<1x32xf32>
    %129 = vector.broadcast %128 : vector<1x32xf32> to vector<8x32xf32>
    %130 = arith.addf %127, %129 : vector<8x32xf32>
    %131 = arith.truncf %3 : vector<12x32xf32> to vector<12x32xbf16>
    %c0_49 = arith.constant 0 : index
    %c0_50 = arith.constant 0 : index
    %132 = vector.load %arg9[%c0_49, %c0_50] : memref<32x64xbf16, #tpu.memory_space<vmem>>, vector<32x64xbf16>
    %cst_51 = arith.constant dense<0.000000e+00> : vector<12x64xf32>
    %133 = tpu.matmul %131, %132, %cst_51 {dimension_numbers = #tpu.dot_dimension_numbers<[1], [0], [0], [1], [0, 0, 1, 1], [], []>} : vector<12x32xbf16>, vector<32x64xbf16>, vector<12x64xf32> -> vector<12x64xf32>
    %c0_52 = arith.constant 0 : index
    %c0_53 = arith.constant 0 : index
    %134 = vector.load %arg10[%c0_52, %c0_53] : memref<1x64xf32, #tpu.memory_space<vmem>>, vector<1x64xf32>
    %135 = vector.broadcast %134 : vector<1x64xf32> to vector<12x64xf32>
    %136 = arith.addf %133, %135 : vector<12x64xf32>
    %137 = vector.extract_strided_slice %136 {offsets = [0, 0], sizes = [12, 32], strides = [1, 1]} : vector<12x64xf32> to vector<12x32xf32>
    %138 = vector.extract_strided_slice %136 {offsets = [0, 32], sizes = [12, 32], strides = [1, 1]} : vector<12x64xf32> to vector<12x32xf32>
    %cst_54 = arith.constant 0.353553385 : f32
    %139 = vector.broadcast %cst_54 : f32 to vector<8x32xf32>
    %140 = arith.mulf %130, %139 : vector<8x32xf32>
    %141 = arith.truncf %140 : vector<8x32xf32> to vector<8x32xbf16>
    %142 = arith.truncf %137 : vector<12x32xf32> to vector<12x32xbf16>
    %143 = arith.truncf %138 : vector<12x32xf32> to vector<12x32xbf16>
    %144 = vector.extract_strided_slice %141 {offsets = [0, 0], sizes = [8, 8], strides = [1, 1]} : vector<8x32xbf16> to vector<8x8xbf16>
    %145 = vector.extract_strided_slice %142 {offsets = [0, 0], sizes = [12, 8], strides = [1, 1]} : vector<12x32xbf16> to vector<12x8xbf16>
    %146 = vector.extract_strided_slice %143 {offsets = [0, 0], sizes = [12, 8], strides = [1, 1]} : vector<12x32xbf16> to vector<12x8xbf16>
    %cst_55 = arith.constant dense<0.000000e+00> : vector<8x12xf32>
    %147 = tpu.matmul %144, %145, %cst_55 {dimension_numbers = #tpu.dot_dimension_numbers<[1], [1], [0], [0], [0, 0, 1, 0], [], []>} : vector<8x8xbf16>, vector<12x8xbf16>, vector<8x12xf32> -> vector<8x12xf32>
    %cst_56 = arith.constant dense<0xFF800000> : vector<8xf32>
    %148 = vector.multi_reduction <maximumf>, %147, %cst_56 [1] : vector<8x12xf32> to vector<8xf32>
    %149 = vector.shape_cast %148 : vector<8xf32> to vector<8x1xf32>
    %150 = vector.broadcast %149 : vector<8x1xf32> to vector<8x12xf32>
    %151 = arith.subf %147, %150 : vector<8x12xf32>
    %152 = math.exp %151 : vector<8x12xf32>
    %cst_57 = arith.constant dense<0.000000e+00> : vector<8xf32>
    %153 = vector.multi_reduction <add>, %152, %cst_57 [1] : vector<8x12xf32> to vector<8xf32>
    %154 = vector.shape_cast %153 : vector<8xf32> to vector<8x1xf32>
    %155 = tpu.reciprocal %154 {approx = true} : vector<8x1xf32> -> vector<8x1xf32>
    %156 = vector.broadcast %155 : vector<8x1xf32> to vector<8x12xf32>
    %157 = arith.mulf %152, %156 : vector<8x12xf32>
    %158 = arith.truncf %157 : vector<8x12xf32> to vector<8x12xbf16>
    %cst_58 = arith.constant dense<0.000000e+00> : vector<8x8xf32>
    %159 = tpu.matmul %158, %146, %cst_58 {dimension_numbers = #tpu.dot_dimension_numbers<[1], [0], [0], [1], [0, 0, 1, 1], [], []>} : vector<8x12xbf16>, vector<12x8xbf16>, vector<8x8xf32> -> vector<8x8xf32>
    %160 = vector.extract_strided_slice %141 {offsets = [0, 8], sizes = [8, 8], strides = [1, 1]} : vector<8x32xbf16> to vector<8x8xbf16>
    %161 = vector.extract_strided_slice %142 {offsets = [0, 8], sizes = [12, 8], strides = [1, 1]} : vector<12x32xbf16> to vector<12x8xbf16>
    %162 = vector.extract_strided_slice %143 {offsets = [0, 8], sizes = [12, 8], strides = [1, 1]} : vector<12x32xbf16> to vector<12x8xbf16>
    %cst_59 = arith.constant dense<0.000000e+00> : vector<8x12xf32>
    %163 = tpu.matmul %160, %161, %cst_59 {dimension_numbers = #tpu.dot_dimension_numbers<[1], [1], [0], [0], [0, 0, 1, 0], [], []>} : vector<8x8xbf16>, vector<12x8xbf16>, vector<8x12xf32> -> vector<8x12xf32>
    %cst_60 = arith.constant dense<0xFF800000> : vector<8xf32>
    %164 = vector.multi_reduction <maximumf>, %163, %cst_60 [1] : vector<8x12xf32> to vector<8xf32>
    %165 = vector.shape_cast %164 : vector<8xf32> to vector<8x1xf32>
    %166 = vector.broadcast %165 : vector<8x1xf32> to vector<8x12xf32>
    %167 = arith.subf %163, %166 : vector<8x12xf32>
    %168 = math.exp %167 : vector<8x12xf32>
    %cst_61 = arith.constant dense<0.000000e+00> : vector<8xf32>
    %169 = vector.multi_reduction <add>, %168, %cst_61 [1] : vector<8x12xf32> to vector<8xf32>
    %170 = vector.shape_cast %169 : vector<8xf32> to vector<8x1xf32>
    %171 = tpu.reciprocal %170 {approx = true} : vector<8x1xf32> -> vector<8x1xf32>
    %172 = vector.broadcast %171 : vector<8x1xf32> to vector<8x12xf32>
    %173 = arith.mulf %168, %172 : vector<8x12xf32>
    %174 = arith.truncf %173 : vector<8x12xf32> to vector<8x12xbf16>
    %cst_62 = arith.constant dense<0.000000e+00> : vector<8x8xf32>
    %175 = tpu.matmul %174, %162, %cst_62 {dimension_numbers = #tpu.dot_dimension_numbers<[1], [0], [0], [1], [0, 0, 1, 1], [], []>} : vector<8x12xbf16>, vector<12x8xbf16>, vector<8x8xf32> -> vector<8x8xf32>
    %176 = vector.extract_strided_slice %141 {offsets = [0, 16], sizes = [8, 8], strides = [1, 1]} : vector<8x32xbf16> to vector<8x8xbf16>
    %177 = vector.extract_strided_slice %142 {offsets = [0, 16], sizes = [12, 8], strides = [1, 1]} : vector<12x32xbf16> to vector<12x8xbf16>
    %178 = vector.extract_strided_slice %143 {offsets = [0, 16], sizes = [12, 8], strides = [1, 1]} : vector<12x32xbf16> to vector<12x8xbf16>
    %cst_63 = arith.constant dense<0.000000e+00> : vector<8x12xf32>
    %179 = tpu.matmul %176, %177, %cst_63 {dimension_numbers = #tpu.dot_dimension_numbers<[1], [1], [0], [0], [0, 0, 1, 0], [], []>} : vector<8x8xbf16>, vector<12x8xbf16>, vector<8x12xf32> -> vector<8x12xf32>
    %cst_64 = arith.constant dense<0xFF800000> : vector<8xf32>
    %180 = vector.multi_reduction <maximumf>, %179, %cst_64 [1] : vector<8x12xf32> to vector<8xf32>
    %181 = vector.shape_cast %180 : vector<8xf32> to vector<8x1xf32>
    %182 = vector.broadcast %181 : vector<8x1xf32> to vector<8x12xf32>
    %183 = arith.subf %179, %182 : vector<8x12xf32>
    %184 = math.exp %183 : vector<8x12xf32>
    %cst_65 = arith.constant dense<0.000000e+00> : vector<8xf32>
    %185 = vector.multi_reduction <add>, %184, %cst_65 [1] : vector<8x12xf32> to vector<8xf32>
    %186 = vector.shape_cast %185 : vector<8xf32> to vector<8x1xf32>
    %187 = tpu.reciprocal %186 {approx = true} : vector<8x1xf32> -> vector<8x1xf32>
    %188 = vector.broadcast %187 : vector<8x1xf32> to vector<8x12xf32>
    %189 = arith.mulf %184, %188 : vector<8x12xf32>
    %190 = arith.truncf %189 : vector<8x12xf32> to vector<8x12xbf16>
    %cst_66 = arith.constant dense<0.000000e+00> : vector<8x8xf32>
    %191 = tpu.matmul %190, %178, %cst_66 {dimension_numbers = #tpu.dot_dimension_numbers<[1], [0], [0], [1], [0, 0, 1, 1], [], []>} : vector<8x12xbf16>, vector<12x8xbf16>, vector<8x8xf32> -> vector<8x8xf32>
    %192 = vector.extract_strided_slice %141 {offsets = [0, 24], sizes = [8, 8], strides = [1, 1]} : vector<8x32xbf16> to vector<8x8xbf16>
    %193 = vector.extract_strided_slice %142 {offsets = [0, 24], sizes = [12, 8], strides = [1, 1]} : vector<12x32xbf16> to vector<12x8xbf16>
    %194 = vector.extract_strided_slice %143 {offsets = [0, 24], sizes = [12, 8], strides = [1, 1]} : vector<12x32xbf16> to vector<12x8xbf16>
    %cst_67 = arith.constant dense<0.000000e+00> : vector<8x12xf32>
    %195 = tpu.matmul %192, %193, %cst_67 {dimension_numbers = #tpu.dot_dimension_numbers<[1], [1], [0], [0], [0, 0, 1, 0], [], []>} : vector<8x8xbf16>, vector<12x8xbf16>, vector<8x12xf32> -> vector<8x12xf32>
    %cst_68 = arith.constant dense<0xFF800000> : vector<8xf32>
    %196 = vector.multi_reduction <maximumf>, %195, %cst_68 [1] : vector<8x12xf32> to vector<8xf32>
    %197 = vector.shape_cast %196 : vector<8xf32> to vector<8x1xf32>
    %198 = vector.broadcast %197 : vector<8x1xf32> to vector<8x12xf32>
    %199 = arith.subf %195, %198 : vector<8x12xf32>
    %200 = math.exp %199 : vector<8x12xf32>
    %cst_69 = arith.constant dense<0.000000e+00> : vector<8xf32>
    %201 = vector.multi_reduction <add>, %200, %cst_69 [1] : vector<8x12xf32> to vector<8xf32>
    %202 = vector.shape_cast %201 : vector<8xf32> to vector<8x1xf32>
    %203 = tpu.reciprocal %202 {approx = true} : vector<8x1xf32> -> vector<8x1xf32>
    %204 = vector.broadcast %203 : vector<8x1xf32> to vector<8x12xf32>
    %205 = arith.mulf %200, %204 : vector<8x12xf32>
    %206 = arith.truncf %205 : vector<8x12xf32> to vector<8x12xbf16>
    %cst_70 = arith.constant dense<0.000000e+00> : vector<8x8xf32>
    %207 = tpu.matmul %206, %194, %cst_70 {dimension_numbers = #tpu.dot_dimension_numbers<[1], [0], [0], [1], [0, 0, 1, 1], [], []>} : vector<8x12xbf16>, vector<12x8xbf16>, vector<8x8xf32> -> vector<8x8xf32>
    %208 = tpu.concatenate %159, %175, %191, %207 in 1 : vector<8x8xf32>, vector<8x8xf32>, vector<8x8xf32>, vector<8x8xf32> -> vector<8x32xf32>
    %209 = arith.truncf %208 : vector<8x32xf32> to vector<8x32xbf16>
    %c0_71 = arith.constant 0 : index
    %c0_72 = arith.constant 0 : index
    %210 = vector.load %arg11[%c0_71, %c0_72] : memref<32x32xbf16, #tpu.memory_space<vmem>>, vector<32x32xbf16>
    %cst_73 = arith.constant dense<0.000000e+00> : vector<8x32xf32>
    %211 = tpu.matmul %209, %210, %cst_73 {dimension_numbers = #tpu.dot_dimension_numbers<[1], [0], [0], [1], [0, 0, 1, 1], [], []>} : vector<8x32xbf16>, vector<32x32xbf16>, vector<8x32xf32> -> vector<8x32xf32>
    %c0_74 = arith.constant 0 : index
    %c0_75 = arith.constant 0 : index
    %212 = vector.load %arg12[%c0_74, %c0_75] : memref<1x32xf32, #tpu.memory_space<vmem>>, vector<1x32xf32>
    %213 = vector.broadcast %212 : vector<1x32xf32> to vector<8x32xf32>
    %214 = arith.addf %211, %213 : vector<8x32xf32>
    %c0_76 = arith.constant 0 : index
    %c0_77 = arith.constant 0 : index
    %215 = vector.load %arg19[%c0_76, %c0_77] : memref<1x32xf32, #tpu.memory_space<vmem>>, vector<1x32xf32>
    %c0_78 = arith.constant 0 : index
    %c0_79 = arith.constant 0 : index
    %216 = vector.load %arg20[%c0_78, %c0_79] : memref<1x32xf32, #tpu.memory_space<vmem>>, vector<1x32xf32>
    %217 = arith.addf %124, %214 : vector<8x32xf32>
    %cst_80 = arith.constant dense<0.000000e+00> : vector<8xf32>
    %218 = vector.multi_reduction <add>, %217, %cst_80 [1] : vector<8x32xf32> to vector<8xf32>
    %219 = vector.shape_cast %218 : vector<8xf32> to vector<8x1xf32>
    %cst_81 = arith.constant 3.200000e+01 : f32
    %220 = vector.broadcast %cst_81 : f32 to vector<8x1xf32>
    %221 = arith.divf %219, %220 : vector<8x1xf32>
    %222 = vector.broadcast %221 : vector<8x1xf32> to vector<8x32xf32>
    %223 = arith.subf %217, %222 : vector<8x32xf32>
    %224 = arith.mulf %223, %223 : vector<8x32xf32>
    %cst_82 = arith.constant dense<0.000000e+00> : vector<8xf32>
    %225 = vector.multi_reduction <add>, %224, %cst_82 [1] : vector<8x32xf32> to vector<8xf32>
    %226 = vector.shape_cast %225 : vector<8xf32> to vector<8x1xf32>
    %cst_83 = arith.constant 3.200000e+01 : f32
    %227 = vector.broadcast %cst_83 : f32 to vector<8x1xf32>
    %228 = arith.divf %226, %227 : vector<8x1xf32>
    %229 = vector.broadcast %221 : vector<8x1xf32> to vector<8x32xf32>
    %230 = arith.subf %217, %229 : vector<8x32xf32>
    %cst_84 = arith.constant 9.99999974E-6 : f32
    %231 = vector.broadcast %cst_84 : f32 to vector<8x1xf32>
    %232 = arith.addf %228, %231 : vector<8x1xf32>
    %233 = math.rsqrt %232 : vector<8x1xf32>
    %234 = vector.broadcast %233 : vector<8x1xf32> to vector<8x32xf32>
    %235 = arith.mulf %230, %234 : vector<8x32xf32>
    %236 = vector.broadcast %215 : vector<1x32xf32> to vector<8x32xf32>
    %237 = arith.mulf %235, %236 : vector<8x32xf32>
    %238 = vector.broadcast %216 : vector<1x32xf32> to vector<8x32xf32>
    %239 = arith.addf %237, %238 : vector<8x32xf32>
    %240 = arith.truncf %239 : vector<8x32xf32> to vector<8x32xbf16>
    %c0_85 = arith.constant 0 : index
    %c0_86 = arith.constant 0 : index
    %241 = vector.load %arg13[%c0_85, %c0_86] : memref<32x128xbf16, #tpu.memory_space<vmem>>, vector<32x128xbf16>
    %cst_87 = arith.constant dense<0.000000e+00> : vector<8x128xf32>
    %242 = tpu.matmul %240, %241, %cst_87 {dimension_numbers = #tpu.dot_dimension_numbers<[1], [0], [0], [1], [0, 0, 1, 1], [], []>} : vector<8x32xbf16>, vector<32x128xbf16>, vector<8x128xf32> -> vector<8x128xf32>
    %c0_88 = arith.constant 0 : index
    %c0_89 = arith.constant 0 : index
    %243 = vector.load %arg14[%c0_88, %c0_89] : memref<1x128xf32, #tpu.memory_space<vmem>>, vector<1x128xf32>
    %244 = vector.broadcast %243 : vector<1x128xf32> to vector<8x128xf32>
    %245 = arith.addf %242, %244 : vector<8x128xf32>
    %cst_90 = arith.constant 0.000000e+00 : f32
    %246 = vector.broadcast %cst_90 : f32 to vector<8x128xf32>
    %247 = arith.maximumf %245, %246 : vector<8x128xf32>
    %248 = arith.truncf %247 : vector<8x128xf32> to vector<8x128xbf16>
    %c0_91 = arith.constant 0 : index
    %c0_92 = arith.constant 0 : index
    %249 = vector.load %arg15[%c0_91, %c0_92] : memref<128x32xbf16, #tpu.memory_space<vmem>>, vector<128x32xbf16>
    %cst_93 = arith.constant dense<0.000000e+00> : vector<8x32xf32>
    %250 = tpu.matmul %248, %249, %cst_93 {dimension_numbers = #tpu.dot_dimension_numbers<[1], [0], [0], [1], [0, 0, 1, 1], [], []>} : vector<8x128xbf16>, vector<128x32xbf16>, vector<8x32xf32> -> vector<8x32xf32>
    %c0_94 = arith.constant 0 : index
    %c0_95 = arith.constant 0 : index
    %251 = vector.load %arg16[%c0_94, %c0_95] : memref<1x32xf32, #tpu.memory_space<vmem>>, vector<1x32xf32>
    %252 = vector.broadcast %251 : vector<1x32xf32> to vector<8x32xf32>
    %253 = arith.addf %250, %252 : vector<8x32xf32>
    %c0_96 = arith.constant 0 : index
    %c0_97 = arith.constant 0 : index
    %254 = vector.load %arg21[%c0_96, %c0_97] : memref<1x32xf32, #tpu.memory_space<vmem>>, vector<1x32xf32>
    %c0_98 = arith.constant 0 : index
    %c0_99 = arith.constant 0 : index
    %255 = vector.load %arg22[%c0_98, %c0_99] : memref<1x32xf32, #tpu.memory_space<vmem>>, vector<1x32xf32>
    %256 = arith.addf %239, %253 : vector<8x32xf32>
    %cst_100 = arith.constant dense<0.000000e+00> : vector<8xf32>
    %257 = vector.multi_reduction <add>, %256, %cst_100 [1] : vector<8x32xf32> to vector<8xf32>
    %258 = vector.shape_cast %257 : vector<8xf32> to vector<8x1xf32>
    %cst_101 = arith.constant 3.200000e+01 : f32
    %259 = vector.broadcast %cst_101 : f32 to vector<8x1xf32>
    %260 = arith.divf %258, %259 : vector<8x1xf32>
    %261 = vector.broadcast %260 : vector<8x1xf32> to vector<8x32xf32>
    %262 = arith.subf %256, %261 : vector<8x32xf32>
    %263 = arith.mulf %262, %262 : vector<8x32xf32>
    %cst_102 = arith.constant dense<0.000000e+00> : vector<8xf32>
    %264 = vector.multi_reduction <add>, %263, %cst_102 [1] : vector<8x32xf32> to vector<8xf32>
    %265 = vector.shape_cast %264 : vector<8xf32> to vector<8x1xf32>
    %cst_103 = arith.constant 3.200000e+01 : f32
    %266 = vector.broadcast %cst_103 : f32 to vector<8x1xf32>
    %267 = arith.divf %265, %266 : vector<8x1xf32>
    %268 = vector.broadcast %260 : vector<8x1xf32> to vector<8x32xf32>
    %269 = arith.subf %256, %268 : vector<8x32xf32>
    %cst_104 = arith.constant 9.99999974E-6 : f32
    %270 = vector.broadcast %cst_104 : f32 to vector<8x1xf32>
    %271 = arith.addf %267, %270 : vector<8x1xf32>
    %272 = math.rsqrt %271 : vector<8x1xf32>
    %273 = vector.broadcast %272 : vector<8x1xf32> to vector<8x32xf32>
    %274 = arith.mulf %269, %273 : vector<8x32xf32>
    %275 = vector.broadcast %254 : vector<1x32xf32> to vector<8x32xf32>
    %276 = arith.mulf %274, %275 : vector<8x32xf32>
    %277 = vector.broadcast %255 : vector<1x32xf32> to vector<8x32xf32>
    %278 = arith.addf %276, %277 : vector<8x32xf32>
    %c0_105 = arith.constant 0 : index
    %c0_106 = arith.constant 0 : index
    %c0_107 = arith.constant 0 : index
    %279 = vector.load %arg23[%c0_105, %c0_106, %c0_107] : memref<1x8x32xf32, #tpu.memory_space<vmem>>, vector<1x8x32xf32>
    %280 = vector.shape_cast %279 : vector<1x8x32xf32> to vector<8x32xf32>
    %281 = vector.shape_cast %278 : vector<8x32xf32> to vector<1x8x32xf32>
    tpu.vector_store %arg23[%c0_105, %c0_106, %c0_107], %281 {strides = array<i32>} : memref<1x8x32xf32, #tpu.memory_space<vmem>>, vector<1x8x32xf32>,
    return
  }
  func.func @transform_0(%arg0: i32) -> (i32, i32, i32) {
    %c0_i32 = arith.constant 0 : i32
    %c0_i32_0 = arith.constant 0 : i32
    %c0_i32_1 = arith.constant 0 : i32
    return %arg0, %c0_i32, %c0_i32_0 : i32, i32, i32
  }
  func.func @transform_1(%arg0: i32) -> (i32, i32, i32) {
    %c0_i32 = arith.constant 0 : i32
    %c0_i32_0 = arith.constant 0 : i32
    %c0_i32_1 = arith.constant 0 : i32
    return %arg0, %c0_i32, %c0_i32_0 : i32, i32, i32
  }
  func.func @transform_2(%arg0: i32) -> (i32, i32) {
    %c0_i32 = arith.constant 0 : i32
    %c0_i32_0 = arith.constant 0 : i32
    %c0_i32_1 = arith.constant 0 : i32
    return %c0_i32, %c0_i32_0 : i32, i32
  }
  func.func @transform_3(%arg0: i32) -> (i32, i32) {
    %c0_i32 = arith.constant 0 : i32
    %c0_i32_0 = arith.constant 0 : i32
    %c0_i32_1 = arith.constant 0 : i32
    return %c0_i32, %c0_i32_0 : i32, i32
  }
  func.func @transform_4(%arg0: i32) -> (i32, i32) {
    %c0_i32 = arith.constant 0 : i32
    %c0_i32_0 = arith.constant 0 : i32
    %c0_i32_1 = arith.constant 0 : i32
    return %c0_i32, %c0_i32_0 : i32, i32
  }
  func.func @transform_5(%arg0: i32) -> (i32, i32) {
    %c0_i32 = arith.constant 0 : i32
    %c0_i32_0 = arith.constant 0 : i32
    %c0_i32_1 = arith.constant 0 : i32
    return %c0_i32, %c0_i32_0 : i32, i32
  }
  func.func @transform_6(%arg0: i32) -> (i32, i32) {
    %c0_i32 = arith.constant 0 : i32
    %c0_i32_0 = arith.constant 0 : i32
    %c0_i32_1 = arith.constant 0 : i32
    return %c0_i32, %c0_i32_0 : i32, i32
  }
  func.func @transform_7(%arg0: i32) -> (i32, i32) {
    %c0_i32 = arith.constant 0 : i32
    %c0_i32_0 = arith.constant 0 : i32
    %c0_i32_1 = arith.constant 0 : i32
    return %c0_i32, %c0_i32_0 : i32, i32
  }
  func.func @transform_8(%arg0: i32) -> (i32, i32) {
    %c0_i32 = arith.constant 0 : i32
    %c0_i32_0 = arith.constant 0 : i32
    %c0_i32_1 = arith.constant 0 : i32
    return %c0_i32, %c0_i32_0 : i32, i32
  }
  func.func @transform_9(%arg0: i32) -> (i32, i32) {
    %c0_i32 = arith.constant 0 : i32
    %c0_i32_0 = arith.constant 0 : i32
    %c0_i32_1 = arith.constant 0 : i32
    return %c0_i32, %c0_i32_0 : i32, i32
  }
  func.func @transform_10(%arg0: i32) -> (i32, i32) {
    %c0_i32 = arith.constant 0 : i32
    %c0_i32_0 = arith.constant 0 : i32
    %c0_i32_1 = arith.constant 0 : i32
    return %c0_i32, %c0_i32_0 : i32, i32
  }
  func.func @transform_11(%arg0: i32) -> (i32, i32) {
    %c0_i32 = arith.constant 0 : i32
    %c0_i32_0 = arith.constant 0 : i32
    %c0_i32_1 = arith.constant 0 : i32
    return %c0_i32, %c0_i32_0 : i32, i32
  }
  func.func @transform_12(%arg0: i32) -> (i32, i32) {
    %c0_i32 = arith.constant 0 : i32
    %c0_i32_0 = arith.constant 0 : i32
    %c0_i32_1 = arith.constant 0 : i32
    return %c0_i32, %c0_i32_0 : i32, i32
  }
  func.func @transform_13(%arg0: i32) -> (i32, i32) {
    %c0_i32 = arith.constant 0 : i32
    %c0_i32_0 = arith.constant 0 : i32
    %c0_i32_1 = arith.constant 0 : i32
    return %c0_i32, %c0_i32_0 : i32, i32
  }
  func.func @transform_14(%arg0: i32) -> (i32, i32) {
    %c0_i32 = arith.constant 0 : i32
    %c0_i32_0 = arith.constant 0 : i32
    %c0_i32_1 = arith.constant 0 : i32
    return %c0_i32, %c0_i32_0 : i32, i32
  }
  func.func @transform_15(%arg0: i32) -> (i32, i32) {
    %c0_i32 = arith.constant 0 : i32
    %c0_i32_0 = arith.constant 0 : i32
    %c0_i32_1 = arith.constant 0 : i32
    return %c0_i32, %c0_i32_0 : i32, i32
  }
  func.func @transform_16(%arg0: i32) -> (i32, i32) {
    %c0_i32 = arith.constant 0 : i32
    %c0_i32_0 = arith.constant 0 : i32
    %c0_i32_1 = arith.constant 0 : i32
    return %c0_i32, %c0_i32_0 : i32, i32
  }
  func.func @transform_17(%arg0: i32) -> (i32, i32) {
    %c0_i32 = arith.constant 0 : i32
    %c0_i32_0 = arith.constant 0 : i32
    %c0_i32_1 = arith.constant 0 : i32
    return %c0_i32, %c0_i32_0 : i32, i32
  }
  func.func @transform_18(%arg0: i32) -> (i32, i32) {
    %c0_i32 = arith.constant 0 : i32
    %c0_i32_0 = arith.constant 0 : i32
    %c0_i32_1 = arith.constant 0 : i32
    return %c0_i32, %c0_i32_0 : i32, i32
  }
  func.func @transform_19(%arg0: i32) -> (i32, i32) {
    %c0_i32 = arith.constant 0 : i32
    %c0_i32_0 = arith.constant 0 : i32
    %c0_i32_1 = arith.constant 0 : i32
    return %c0_i32, %c0_i32_0 : i32, i32
  }
  func.func @transform_20(%arg0: i32) -> (i32, i32) {
    %c0_i32 = arith.constant 0 : i32
    %c0_i32_0 = arith.constant 0 : i32
    %c0_i32_1 = arith.constant 0 : i32
    return %c0_i32, %c0_i32_0 : i32, i32
  }
  func.func @transform_21(%arg0: i32) -> (i32, i32) {
    %c0_i32 = arith.constant 0 : i32
    %c0_i32_0 = arith.constant 0 : i32
    %c0_i32_1 = arith.constant 0 : i32
    return %c0_i32, %c0_i32_0 : i32, i32
  }
  func.func @transform_22(%arg0: i32) -> (i32, i32, i32) {
    %c0_i32 = arith.constant 0 : i32
    %c0_i32_0 = arith.constant 0 : i32
    %c0_i32_1 = arith.constant 0 : i32
    return %arg0, %c0_i32, %c0_i32_0 : i32, i32, i32
  }
}

</mosaic_0001>

<llo_original>
// kernel: tpu_custom_call.1
$region0: #{tpu_custom_call.1}
  #allocation0 [shape = 'u32[]', space=smem, size = 0x4, offset = 0x4, fixed_abs, tag = 'smem constant byte address 0x4 - core index']
  #allocation1 [shape = 'u32[144,128]{1,0:T(1,128)}', space=vmem, size = 0x12000, scoped, tag = 'internal scratch']
  %s0 = inlined_call_operand.vmem [shape: f32[2,8,32], index: 0, kind: input, shape index: {}]
  %s1 = inlined_call_operand.vmem [shape: f32[2,12,32], index: 1, kind: input, shape index: {}]
  %s2 = inlined_call_operand.vmem [shape: bf16[32,96], index: 2, kind: input, shape index: {}]
  %s3 = inlined_call_operand.vmem [shape: f32[1,96], index: 3, kind: input, shape index: {}]
  %s4 = inlined_call_operand.vmem [shape: bf16[32,32], index: 4, kind: input, shape index: {}]
  %s5 = inlined_call_operand.vmem [shape: f32[1,32], index: 5, kind: input, shape index: {}]
  %s6 = inlined_call_operand.vmem [shape: bf16[32,32], index: 6, kind: input, shape index: {}]
  %s7 = inlined_call_operand.vmem [shape: f32[1,32], index: 7, kind: input, shape index: {}]
  %s8 = inlined_call_operand.vmem [shape: bf16[32,64], index: 8, kind: input, shape index: {}]
  %s9 = inlined_call_operand.vmem [shape: f32[1,64], index: 9, kind: input, shape index: {}]
  %s10 = inlined_call_operand.vmem [shape: bf16[32,32], index: 10, kind: input, shape index: {}]
  %s11 = inlined_call_operand.vmem [shape: f32[1,32], index: 11, kind: input, shape index: {}]
  %s12 = inlined_call_operand.vmem [shape: bf16[32,128], index: 12, kind: input, shape index: {}]
  %s13 = inlined_call_operand.vmem [shape: f32[1,128], index: 13, kind: input, shape index: {}]
  %s14 = inlined_call_operand.vmem [shape: bf16[128,32], index: 14, kind: input, shape index: {}]
  %s15 = inlined_call_operand.vmem [shape: f32[1,32], index: 15, kind: input, shape index: {}]
  %s16 = inlined_call_operand.vmem [shape: f32[1,32], index: 16, kind: input, shape index: {}]
  %s17 = inlined_call_operand.vmem [shape: f32[1,32], index: 17, kind: input, shape index: {}]
  %s18 = inlined_call_operand.vmem [shape: f32[1,32], index: 18, kind: input, shape index: {}]
  %s19 = inlined_call_operand.vmem [shape: f32[1,32], index: 19, kind: input, shape index: {}]
  %s20 = inlined_call_operand.vmem [shape: f32[1,32], index: 20, kind: input, shape index: {}]
  %s21 = inlined_call_operand.vmem [shape: f32[1,32], index: 21, kind: input, shape index: {}]
  %s22 = inlined_call_operand.hbm [shape: f32[2,8,32], index: 22, kind: output, shape index: {}]
  %s23 = sld [smem:[#allocation0]]
  $region121: #{tpu_custom_call.1} parent=0
    _
  %s25 = ssub.s32 1, %s23
  %s26 = scalar_select 0, %s25, %s23
  $region1: #{tpu_custom_call.1} parent=0
    #allocation2 [shape = 'u8[8192]{0}', space=vmem, size = 0x2000, scoped, tag = 'output window, operand 0']
    #allocation3 [shape = 's32[2]{0}', space=sflag, size = 0x8, scoped, tag = 'scoped memory for tpu_custom_call.1']
    %27 = vsyncpa [#allocation3], 0
    %s28 = scalar_lea.sflag [#allocation3], 1
    %29 = vsyncpa %s28, 0
    loop: start=0, step=1, limit=4
    $region2: #{tpu_custom_call.1} parent=1 // loop_pre_header
      _
    $region3: #{tpu_custom_call.1} parent=1 // loop_header
      %s31 = sphi 0, %s35
      %p32 = scmp.ge.s32.totalorder %s31, 4
      %s41 = sphi 0, %s43
      %s44 = sphi 0, %s41
      %s45 = sphi 0, %s44
      %s61 = sphi 0, %s45
      %s67 = sphi 0, %s69
      %s70 = sphi 0, %s67
      %s71 = sphi 0, %s70
      %s87 = sphi 0, %s71
      %s91 = sphi 0, %s91
      %s93 = sphi 0, %s91
      %s94 = sphi 0, %s93
      %s108 = sphi 0, %s94
      %s112 = sphi 0, %s112
      %s114 = sphi 0, %s112
      %s115 = sphi 0, %s114
      %s129 = sphi 0, %s115
      %s133 = sphi 0, %s133
      %s135 = sphi 0, %s133
      %s136 = sphi 0, %s135
      %s150 = sphi 0, %s136
      %s154 = sphi 0, %s154
      %s156 = sphi 0, %s154
      %s157 = sphi 0, %s156
      %s171 = sphi 0, %s157
      %s175 = sphi 0, %s175
      %s177 = sphi 0, %s175
      %s178 = sphi 0, %s177
      %s192 = sphi 0, %s178
      %s196 = sphi 0, %s196
      %s198 = sphi 0, %s196
      %s199 = sphi 0, %s198
      %s213 = sphi 0, %s199
      %s217 = sphi 0, %s217
      %s219 = sphi 0, %s217
      %s220 = sphi 0, %s219
      %s234 = sphi 0, %s220
      %s238 = sphi 0, %s238
      %s240 = sphi 0, %s238
      %s241 = sphi 0, %s240
      %s255 = sphi 0, %s241
      %s259 = sphi 0, %s259
      %s261 = sphi 0, %s259
      %s262 = sphi 0, %s261
      %s276 = sphi 0, %s262
      %s280 = sphi 0, %s280
      %s282 = sphi 0, %s280
      %s283 = sphi 0, %s282
      %s297 = sphi 0, %s283
      %s301 = sphi 0, %s301
      %s303 = sphi 0, %s301
      %s304 = sphi 0, %s303
      %s318 = sphi 0, %s304
      %s322 = sphi 0, %s322
      %s324 = sphi 0, %s322
      %s325 = sphi 0, %s324
      %s339 = sphi 0, %s325
      %s343 = sphi 0, %s343
      %s345 = sphi 0, %s343
      %s346 = sphi 0, %s345
      %s360 = sphi 0, %s346
      %s364 = sphi 0, %s364
      %s366 = sphi 0, %s364
      %s367 = sphi 0, %s366
      %s381 = sphi 0, %s367
      %s385 = sphi 0, %s385
      %s387 = sphi 0, %s385
      %s388 = sphi 0, %s387
      %s402 = sphi 0, %s388
      %s406 = sphi 0, %s406
      %s408 = sphi 0, %s406
      %s409 = sphi 0, %s408
      %s423 = sphi 0, %s409
      %s427 = sphi 0, %s427
      %s429 = sphi 0, %s427
      %s430 = sphi 0, %s429
      %s444 = sphi 0, %s430
      %s448 = sphi 0, %s448
      %s450 = sphi 0, %s448
      %s451 = sphi 0, %s450
      %s465 = sphi 0, %s451
      %s469 = sphi 0, %s469
      %s471 = sphi 0, %s469
      %s472 = sphi 0, %s471
      %s486 = sphi 0, %s472
      %s490 = sphi 0, %s490
      %s492 = sphi 0, %s490
      %s493 = sphi 0, %s492
      %s507 = sphi 0, %s493
      %s513 = sphi 0, %s515
      %s516 = sphi 0, %s513
      %s517 = sphi 0, %s516
      %s533 = sphi 0, %s517
    $region4: #{tpu_custom_call.1} parent=1 // loop_header_branch
      %34 = sbr.rel (%p32) target = $region8
    $region5: #{tpu_custom_call.1} parent=1 // loop_body
      %s36 = ssub.s32 %s31, 1
      %s37 = ssub.s32 %s31, 2
      %s38 = sadd.s32 %s31, 1
      %s39 = ssub.s32 %s31, %s38
      %p40 = scmp.eq.s32.totalorder %s39, 0
      %s42 = sadd.s32 %s41, 1
      %s43 = scalar_select %p40, %s41, %s42
      %p46 = pneg %p40
      %p47 = scmp.eq.s32.totalorder %s31, 1
      %p48 = por %p46, %p47
      %p49 = scmp.ne.s32.totalorder %s41, %s44
      %p50 = scmp.eq.s32.totalorder %s31, 0
      %p51 = por %p49, %p50
      %p52 = scmp.ne.s32.totalorder %s41, %s44
      %p53 = scmp.eq.s32.totalorder %s36, 1
      %p54 = por %p52, %p53
      %p55 = scmp.ne.s32.totalorder %s44, %s45
      %p56 = scmp.eq.s32.totalorder %s36, 0
      %p57 = por %p55, %p56
      %p58 = scmp.ne.s32.totalorder %s44, %s45
      %p59 = scmp.eq.s32.totalorder %s37, 1
      %p60 = por %p58, %p59
      %p62 = scmp.ne.s32.totalorder %s45, %s61
      %p63 = scmp.eq.s32.totalorder %s37, 0
      %p64 = por %p62, %p63
      %s65 = ssub.s32 %s31, %s38
      %p66 = scmp.eq.s32.totalorder %s65, 0
      %s68 = sadd.s32 %s67, 1
      %s69 = scalar_select %p66, %s67, %s68
      %p72 = pneg %p66
      %p73 = scmp.eq.s32.totalorder %s31, 1
      %p74 = por %p72, %p73
      %p75 = scmp.ne.s32.totalorder %s67, %s70
      %p76 = scmp.eq.s32.totalorder %s31, 0
      %p77 = por %p75, %p76
      %p78 = scmp.ne.s32.totalorder %s67, %s70
      %p79 = scmp.eq.s32.totalorder %s36, 1
      %p80 = por %p78, %p79
      %p81 = scmp.ne.s32.totalorder %s70, %s71
      %p82 = scmp.eq.s32.totalorder %s36, 0
      %p83 = por %p81, %p82
      %p84 = scmp.ne.s32.totalorder %s70, %s71
      %p85 = scmp.eq.s32.totalorder %s37, 1
      %p86 = por %p84, %p85
      %p88 = scmp.ne.s32.totalorder %s71, %s87
      %p89 = scmp.eq.s32.totalorder %s37, 0
      %p90 = por %p88, %p89
      %s92 = sadd.s32 %s91, 1
      %p95 = scmp.eq.s32.totalorder %s31, 1
      %p96 = scmp.ne.s32.totalorder %s91, %s93
      %p97 = scmp.eq.s32.totalorder %s31, 0
      %p98 = por %p96, %p97
      %p99 = scmp.ne.s32.totalorder %s91, %s93
      %p100 = scmp.eq.s32.totalorder %s36, 1
      %p101 = por %p99, %p100
      %p102 = scmp.ne.s32.totalorder %s93, %s94
      %p103 = scmp.eq.s32.totalorder %s36, 0
      %p104 = por %p102, %p103
      %p105 = scmp.ne.s32.totalorder %s93, %s94
      %p106 = scmp.eq.s32.totalorder %s37, 1
      %p107 = por %p105, %p106
      %p109 = scmp.ne.s32.totalorder %s94, %s108
      %p110 = scmp.eq.s32.totalorder %s37, 0
      %p111 = por %p109, %p110
      %s113 = sadd.s32 %s112, 1
      %p116 = scmp.eq.s32.totalorder %s31, 1
      %p117 = scmp.ne.s32.totalorder %s112, %s114
      %p118 = scmp.eq.s32.totalorder %s31, 0
      %p119 = por %p117, %p118
      %p120 = scmp.ne.s32.totalorder %s112, %s114
      %p121 = scmp.eq.s32.totalorder %s36, 1
      %p122 = por %p120, %p121
      %p123 = scmp.ne.s32.totalorder %s114, %s115
      %p124 = scmp.eq.s32.totalorder %s36, 0
      %p125 = por %p123, %p124
      %p126 = scmp.ne.s32.totalorder %s114, %s115
      %p127 = scmp.eq.s32.totalorder %s37, 1
      %p128 = por %p126, %p127
      %p130 = scmp.ne.s32.totalorder %s115, %s129
      %p131 = scmp.eq.s32.totalorder %s37, 0
      %p132 = por %p130, %p131
      %s134 = sadd.s32 %s133, 1
      %p137 = scmp.eq.s32.totalorder %s31, 1
      %p138 = scmp.ne.s32.totalorder %s133, %s135
      %p139 = scmp.eq.s32.totalorder %s31, 0
      %p140 = por %p138, %p139
      %p141 = scmp.ne.s32.totalorder %s133, %s135
      %p142 = scmp.eq.s32.totalorder %s36, 1
      %p143 = por %p141, %p142
      %p144 = scmp.ne.s32.totalorder %s135, %s136
      %p145 = scmp.eq.s32.totalorder %s36, 0
      %p146 = por %p144, %p145
      %p147 = scmp.ne.s32.totalorder %s135, %s136
      %p148 = scmp.eq.s32.totalorder %s37, 1
      %p149 = por %p147, %p148
      %p151 = scmp.ne.s32.totalorder %s136, %s150
      %p152 = scmp.eq.s32.totalorder %s37, 0
      %p153 = por %p151, %p152
      %s155 = sadd.s32 %s154, 1
      %p158 = scmp.eq.s32.totalorder %s31, 1
      %p159 = scmp.ne.s32.totalorder %s154, %s156
      %p160 = scmp.eq.s32.totalorder %s31, 0
      %p161 = por %p159, %p160
      %p162 = scmp.ne.s32.totalorder %s154, %s156
      %p163 = scmp.eq.s32.totalorder %s36, 1
      %p164 = por %p162, %p163
      %p165 = scmp.ne.s32.totalorder %s156, %s157
      %p166 = scmp.eq.s32.totalorder %s36, 0
      %p167 = por %p165, %p166
      %p168 = scmp.ne.s32.totalorder %s156, %s157
      %p169 = scmp.eq.s32.totalorder %s37, 1
      %p170 = por %p168, %p169
      %p172 = scmp.ne.s32.totalorder %s157, %s171
      %p173 = scmp.eq.s32.totalorder %s37, 0
      %p174 = por %p172, %p173
      %s176 = sadd.s32 %s175, 1
      %p179 = scmp.eq.s32.totalorder %s31, 1
      %p180 = scmp.ne.s32.totalorder %s175, %s177
      %p181 = scmp.eq.s32.totalorder %s31, 0
      %p182 = por %p180, %p181
      %p183 = scmp.ne.s32.totalorder %s175, %s177
      %p184 = scmp.eq.s32.totalorder %s36, 1
      %p185 = por %p183, %p184
      %p186 = scmp.ne.s32.totalorder %s177, %s178
      %p187 = scmp.eq.s32.totalorder %s36, 0
      %p188 = por %p186, %p187
      %p189 = scmp.ne.s32.totalorder %s177, %s178
      %p190 = scmp.eq.s32.totalorder %s37, 1
      %p191 = por %p189, %p190
      %p193 = scmp.ne.s32.totalorder %s178, %s192
      %p194 = scmp.eq.s32.totalorder %s37, 0
      %p195 = por %p193, %p194
      %s197 = sadd.s32 %s196, 1
      %p200 = scmp.eq.s32.totalorder %s31, 1
      %p201 = scmp.ne.s32.totalorder %s196, %s198
      %p202 = scmp.eq.s32.totalorder %s31, 0
      %p203 = por %p201, %p202
      %p204 = scmp.ne.s32.totalorder %s196, %s198
      %p205 = scmp.eq.s32.totalorder %s36, 1
      %p206 = por %p204, %p205
      %p207 = scmp.ne.s32.totalorder %s198, %s199
      %p208 = scmp.eq.s32.totalorder %s36, 0
      %p209 = por %p207, %p208
      %p210 = scmp.ne.s32.totalorder %s198, %s199
      %p211 = scmp.eq.s32.totalorder %s37, 1
      %p212 = por %p210, %p211
      %p214 = scmp.ne.s32.totalorder %s199, %s213
      %p215 = scmp.eq.s32.totalorder %s37, 0
      %p216 = por %p214, %p215
      %s218 = sadd.s32 %s217, 1
      %p221 = scmp.eq.s32.totalorder %s31, 1
      %p222 = scmp.ne.s32.totalorder %s217, %s219
      %p223 = scmp.eq.s32.totalorder %s31, 0
      %p224 = por %p222, %p223
      %p225 = scmp.ne.s32.totalorder %s217, %s219
      %p226 = scmp.eq.s32.totalorder %s36, 1
      %p227 = por %p225, %p226
      %p228 = scmp.ne.s32.totalorder %s219, %s220
      %p229 = scmp.eq.s32.totalorder %s36, 0
      %p230 = por %p228, %p229
      %p231 = scmp.ne.s32.totalorder %s219, %s220
      %p232 = scmp.eq.s32.totalorder %s37, 1
      %p233 = por %p231, %p232
      %p235 = scmp.ne.s32.totalorder %s220, %s234
      %p236 = scmp.eq.s32.totalorder %s37, 0
      %p237 = por %p235, %p236
      %s239 = sadd.s32 %s238, 1
      %p242 = scmp.eq.s32.totalorder %s31, 1
      %p243 = scmp.ne.s32.totalorder %s238, %s240
      %p244 = scmp.eq.s32.totalorder %s31, 0
      %p245 = por %p243, %p244
      %p246 = scmp.ne.s32.totalorder %s238, %s240
      %p247 = scmp.eq.s32.totalorder %s36, 1
      %p248 = por %p246, %p247
      %p249 = scmp.ne.s32.totalorder %s240, %s241
      %p250 = scmp.eq.s32.totalorder %s36, 0
      %p251 = por %p249, %p250
      %p252 = scmp.ne.s32.totalorder %s240, %s241
      %p253 = scmp.eq.s32.totalorder %s37, 1
      %p254 = por %p252, %p253
      %p256 = scmp.ne.s32.totalorder %s241, %s255
      %p257 = scmp.eq.s32.totalorder %s37, 0
      %p258 = por %p256, %p257
      %s260 = sadd.s32 %s259, 1
      %p263 = scmp.eq.s32.totalorder %s31, 1
      %p264 = scmp.ne.s32.totalorder %s259, %s261
      %p265 = scmp.eq.s32.totalorder %s31, 0
      %p266 = por %p264, %p265
      %p267 = scmp.ne.s32.totalorder %s259, %s261
      %p268 = scmp.eq.s32.totalorder %s36, 1
      %p269 = por %p267, %p268
      %p270 = scmp.ne.s32.totalorder %s261, %s262
      %p271 = scmp.eq.s32.totalorder %s36, 0
      %p272 = por %p270, %p271
      %p273 = scmp.ne.s32.totalorder %s261, %s262
      %p274 = scmp.eq.s32.totalorder %s37, 1
      %p275 = por %p273, %p274
      %p277 = scmp.ne.s32.totalorder %s262, %s276
      %p278 = scmp.eq.s32.totalorder %s37, 0
      %p279 = por %p277, %p278
      %s281 = sadd.s32 %s280, 1
      %p284 = scmp.eq.s32.totalorder %s31, 1
      %p285 = scmp.ne.s32.totalorder %s280, %s282
      %p286 = scmp.eq.s32.totalorder %s31, 0
      %p287 = por %p285, %p286
      %p288 = scmp.ne.s32.totalorder %s280, %s282
      %p289 = scmp.eq.s32.totalorder %s36, 1
      %p290 = por %p288, %p289
      %p291 = scmp.ne.s32.totalorder %s282, %s283
      %p292 = scmp.eq.s32.totalorder %s36, 0
      %p293 = por %p291, %p292
      %p294 = scmp.ne.s32.totalorder %s282, %s283
      %p295 = scmp.eq.s32.totalorder %s37, 1
      %p296 = por %p294, %p295
      %p298 = scmp.ne.s32.totalorder %s283, %s297
      %p299 = scmp.eq.s32.totalorder %s37, 0
      %p300 = por %p298, %p299
      %s302 = sadd.s32 %s301, 1
      %p305 = scmp.eq.s32.totalorder %s31, 1
      %p306 = scmp.ne.s32.totalorder %s301, %s303
      %p307 = scmp.eq.s32.totalorder %s31, 0
      %p308 = por %p306, %p307
      %p309 = scmp.ne.s32.totalorder %s301, %s303
      %p310 = scmp.eq.s32.totalorder %s36, 1
      %p311 = por %p309, %p310
      %p312 = scmp.ne.s32.totalorder %s303, %s304
      %p313 = scmp.eq.s32.totalorder %s36, 0
      %p314 = por %p312, %p313
      %p315 = scmp.ne.s32.totalorder %s303, %s304
      %p316 = scmp.eq.s32.totalorder %s37, 1
      %p317 = por %p315, %p316
      %p319 = scmp.ne.s32.totalorder %s304, %s318
      %p320 = scmp.eq.s32.totalorder %s37, 0
      %p321 = por %p319, %p320
      %s323 = sadd.s32 %s322, 1
      %p326 = scmp.eq.s32.totalorder %s31, 1
      %p327 = scmp.ne.s32.totalorder %s322, %s324
      %p328 = scmp.eq.s32.totalorder %s31, 0
      %p329 = por %p327, %p328
      %p330 = scmp.ne.s32.totalorder %s322, %s324
      %p331 = scmp.eq.s32.totalorder %s36, 1
      %p332 = por %p330, %p331
      %p333 = scmp.ne.s32.totalorder %s324, %s325
      %p334 = scmp.eq.s32.totalorder %s36, 0
      %p335 = por %p333, %p334
      %p336 = scmp.ne.s32.totalorder %s324, %s325
      %p337 = scmp.eq.s32.totalorder %s37, 1
      %p338 = por %p336, %p337
      %p340 = scmp.ne.s32.totalorder %s325, %s339
      %p341 = scmp.eq.s32.totalorder %s37, 0
      %p342 = por %p340, %p341
      %s344 = sadd.s32 %s343, 1
      %p347 = scmp.eq.s32.totalorder %s31, 1
      %p348 = scmp.ne.s32.totalorder %s343, %s345
      %p349 = scmp.eq.s32.totalorder %s31, 0
      %p350 = por %p348, %p349
      %p351 = scmp.ne.s32.totalorder %s343, %s345
      %p352 = scmp.eq.s32.totalorder %s36, 1
      %p353 = por %p351, %p352
      %p354 = scmp.ne.s32.totalorder %s345, %s346
      %p355 = scmp.eq.s32.totalorder %s36, 0
      %p356 = por %p354, %p355
      %p357 = scmp.ne.s32.totalorder %s345, %s346
      %p358 = scmp.eq.s32.totalorder %s37, 1
      %p359 = por %p357, %p358
      %p361 = scmp.ne.s32.totalorder %s346, %s360
      %p362 = scmp.eq.s32.totalorder %s37, 0
      %p363 = por %p361, %p362
      %s365 = sadd.s32 %s364, 1
      %p368 = scmp.eq.s32.totalorder %s31, 1
      %p369 = scmp.ne.s32.totalorder %s364, %s366
      %p370 = scmp.eq.s32.totalorder %s31, 0
      %p371 = por %p369, %p370
      %p372 = scmp.ne.s32.totalorder %s364, %s366
      %p373 = scmp.eq.s32.totalorder %s36, 1
      %p374 = por %p372, %p373
      %p375 = scmp.ne.s32.totalorder %s366, %s367
      %p376 = scmp.eq.s32.totalorder %s36, 0
      %p377 = por %p375, %p376
      %p378 = scmp.ne.s32.totalorder %s366, %s367
      %p379 = scmp.eq.s32.totalorder %s37, 1
      %p380 = por %p378, %p379
      %p382 = scmp.ne.s32.totalorder %s367, %s381
      %p383 = scmp.eq.s32.totalorder %s37, 0
      %p384 = por %p382, %p383
      %s386 = sadd.s32 %s385, 1
      %p389 = scmp.eq.s32.totalorder %s31, 1
      %p390 = scmp.ne.s32.totalorder %s385, %s387
      %p391 = scmp.eq.s32.totalorder %s31, 0
      %p392 = por %p390, %p391
      %p393 = scmp.ne.s32.totalorder %s385, %s387
      %p394 = scmp.eq.s32.totalorder %s36, 1
      %p395 = por %p393, %p394
      %p396 = scmp.ne.s32.totalorder %s387, %s388
      %p397 = scmp.eq.s32.totalorder %s36, 0
      %p398 = por %p396, %p397
      %p399 = scmp.ne.s32.totalorder %s387, %s388
      %p400 = scmp.eq.s32.totalorder %s37, 1
      %p401 = por %p399, %p400
      %p403 = scmp.ne.s32.totalorder %s388, %s402
      %p404 = scmp.eq.s32.totalorder %s37, 0
      %p405 = por %p403, %p404
      %s407 = sadd.s32 %s406, 1
      %p410 = scmp.eq.s32.totalorder %s31, 1
      %p411 = scmp.ne.s32.totalorder %s406, %s408
      %p412 = scmp.eq.s32.totalorder %s31, 0
      %p413 = por %p411, %p412
      %p414 = scmp.ne.s32.totalorder %s406, %s408
      %p415 = scmp.eq.s32.totalorder %s36, 1
      %p416 = por %p414, %p415
      %p417 = scmp.ne.s32.totalorder %s408, %s409
      %p418 = scmp.eq.s32.totalorder %s36, 0
      %p419 = por %p417, %p418
      %p420 = scmp.ne.s32.totalorder %s408, %s409
      %p421 = scmp.eq.s32.totalorder %s37, 1
      %p422 = por %p420, %p421
      %p424 = scmp.ne.s32.totalorder %s409, %s423
      %p425 = scmp.eq.s32.totalorder %s37, 0
      %p426 = por %p424, %p425
      %s428 = sadd.s32 %s427, 1
      %p431 = scmp.eq.s32.totalorder %s31, 1
      %p432 = scmp.ne.s32.totalorder %s427, %s429
      %p433 = scmp.eq.s32.totalorder %s31, 0
      %p434 = por %p432, %p433
      %p435 = scmp.ne.s32.totalorder %s427, %s429
      %p436 = scmp.eq.s32.totalorder %s36, 1
      %p437 = por %p435, %p436
      %p438 = scmp.ne.s32.totalorder %s429, %s430
      %p439 = scmp.eq.s32.totalorder %s36, 0
      %p440 = por %p438, %p439
      %p441 = scmp.ne.s32.totalorder %s429, %s430
      %p442 = scmp.eq.s32.totalorder %s37, 1
      %p443 = por %p441, %p442
      %p445 = scmp.ne.s32.totalorder %s430, %s444
      %p446 = scmp.eq.s32.totalorder %s37, 0
      %p447 = por %p445, %p446
      %s449 = sadd.s32 %s448, 1
      %p452 = scmp.eq.s32.totalorder %s31, 1
      %p453 = scmp.ne.s32.totalorder %s448, %s450
      %p454 = scmp.eq.s32.totalorder %s31, 0
      %p455 = por %p453, %p454
      %p456 = scmp.ne.s32.totalorder %s448, %s450
      %p457 = scmp.eq.s32.totalorder %s36, 1
      %p458 = por %p456, %p457
      %p459 = scmp.ne.s32.totalorder %s450, %s451
      %p460 = scmp.eq.s32.totalorder %s36, 0
      %p461 = por %p459, %p460
      %p462 = scmp.ne.s32.totalorder %s450, %s451
      %p463 = scmp.eq.s32.totalorder %s37, 1
      %p464 = por %p462, %p463
      %p466 = scmp.ne.s32.totalorder %s451, %s465
      %p467 = scmp.eq.s32.totalorder %s37, 0
      %p468 = por %p466, %p467
      %s470 = sadd.s32 %s469, 1
      %p473 = scmp.eq.s32.totalorder %s31, 1
      %p474 = scmp.ne.s32.totalorder %s469, %s471
      %p475 = scmp.eq.s32.totalorder %s31, 0
      %p476 = por %p474, %p475
      %p477 = scmp.ne.s32.totalorder %s469, %s471
      %p478 = scmp.eq.s32.totalorder %s36, 1
      %p479 = por %p477, %p478
      %p480 = scmp.ne.s32.totalorder %s471, %s472
      %p481 = scmp.eq.s32.totalorder %s36, 0
      %p482 = por %p480, %p481
      %p483 = scmp.ne.s32.totalorder %s471, %s472
      %p484 = scmp.eq.s32.totalorder %s37, 1
      %p485 = por %p483, %p484
      %p487 = scmp.ne.s32.totalorder %s472, %s486
      %p488 = scmp.eq.s32.totalorder %s37, 0
      %p489 = por %p487, %p488
      %s491 = sadd.s32 %s490, 1
      %p494 = scmp.eq.s32.totalorder %s31, 1
      %p495 = scmp.ne.s32.totalorder %s490, %s492
      %p496 = scmp.eq.s32.totalorder %s31, 0
      %p497 = por %p495, %p496
      %p498 = scmp.ne.s32.totalorder %s490, %s492
      %p499 = scmp.eq.s32.totalorder %s36, 1
      %p500 = por %p498, %p499
      %p501 = scmp.ne.s32.totalorder %s492, %s493
      %p502 = scmp.eq.s32.totalorder %s36, 0
      %p503 = por %p501, %p502
      %p504 = scmp.ne.s32.totalorder %s492, %s493
      %p505 = scmp.eq.s32.totalorder %s37, 1
      %p506 = por %p504, %p505
      %p508 = scmp.ne.s32.totalorder %s493, %s507
      %p509 = scmp.eq.s32.totalorder %s37, 0
      %p510 = por %p508, %p509
      %s511 = ssub.s32 %s31, %s38
      %p512 = scmp.eq.s32.totalorder %s511, 0
      %s514 = sadd.s32 %s513, 1
      %s515 = scalar_select %p512, %s513, %s514
      %p518 = pneg %p512
      %p519 = scmp.eq.s32.totalorder %s31, 1
      %p520 = por %p518, %p519
      %p521 = scmp.ne.s32.totalorder %s513, %s516
      %p522 = scmp.eq.s32.totalorder %s31, 0
      %p523 = por %p521, %p522
      %p524 = scmp.ne.s32.totalorder %s513, %s516
      %p525 = scmp.eq.s32.totalorder %s36, 1
      %p526 = por %p524, %p525
      %p527 = scmp.ne.s32.totalorder %s516, %s517
      %p528 = scmp.eq.s32.totalorder %s36, 0
      %p529 = por %p527, %p528
      %p530 = scmp.ne.s32.totalorder %s516, %s517
      %p531 = scmp.eq.s32.totalorder %s37, 1
      %p532 = por %p530, %p531
      %p534 = scmp.ne.s32.totalorder %s517, %s533
      %p535 = scmp.eq.s32.totalorder %s37, 0
      %p536 = por %p534, %p535
      %p537 = scmp.le.s32.totalorder 1, %s31
      %p538 = scmp.lt.s32.totalorder %s31, 3
      %p539 = pnand %p537, %p538
      %p540 = pneg %p539
      // Predicated region
      $region9: #{tpu_custom_call.1} parent=5 // pred_check
        _
      $region10: #{tpu_custom_call.1} parent=5 // pred_check_branch
        %542 = sbr.rel (%p539) target = $region12
      $region11: #{tpu_custom_call.1} parent=5 // pred_region
        %s543 = ssub.s32 %s31, 1
        // Predicated region
        $region13: #{tpu_custom_call.1} parent=11 // pred_check
          %p544 = pneg %p104
        $region14: #{tpu_custom_call.1} parent=11 // pred_check_branch
          %546 = sbr.rel (%p544) target = $region16
        $region15: #{tpu_custom_call.1} parent=11 // pred_region
          _
        $region16: #{tpu_custom_call.1} parent=11 // pred_fallthru
          _
        // Predicated region
        $region17: #{tpu_custom_call.1} parent=11 // pred_check
          %p547 = pneg %p125
        $region18: #{tpu_custom_call.1} parent=11 // pred_check_branch
          %549 = sbr.rel (%p547) target = $region20
        $region19: #{tpu_custom_call.1} parent=11 // pred_region
          _
        $region20: #{tpu_custom_call.1} parent=11 // pred_fallthru
          _
        // Predicated region
        $region21: #{tpu_custom_call.1} parent=11 // pred_check
          %p550 = pneg %p146
        $region22: #{tpu_custom_call.1} parent=11 // pred_check_branch
          %552 = sbr.rel (%p550) target = $region24
        $region23: #{tpu_custom_call.1} parent=11 // pred_region
          _
        $region24: #{tpu_custom_call.1} parent=11 // pred_fallthru
          _
        // Predicated region
        $region25: #{tpu_custom_call.1} parent=11 // pred_check
          %p553 = pneg %p167
        $region26: #{tpu_custom_call.1} parent=11 // pred_check_branch
          %555 = sbr.rel (%p553) target = $region28
        $region27: #{tpu_custom_call.1} parent=11 // pred_region
          _
        $region28: #{tpu_custom_call.1} parent=11 // pred_fallthru
          _
        // Predicated region
        $region29: #{tpu_custom_call.1} parent=11 // pred_check
          %p556 = pneg %p188
        $region30: #{tpu_custom_call.1} parent=11 // pred_check_branch
          %558 = sbr.rel (%p556) target = $region32
        $region31: #{tpu_custom_call.1} parent=11 // pred_region
          _
        $region32: #{tpu_custom_call.1} parent=11 // pred_fallthru
          _
        // Predicated region
        $region33: #{tpu_custom_call.1} parent=11 // pred_check
          %p559 = pneg %p209
        $region34: #{tpu_custom_call.1} parent=11 // pred_check_branch
          %561 = sbr.rel (%p559) target = $region36
        $region35: #{tpu_custom_call.1} parent=11 // pred_region
          _
        $region36: #{tpu_custom_call.1} parent=11 // pred_fallthru
          _
        // Predicated region
        $region37: #{tpu_custom_call.1} parent=11 // pred_check
          %p562 = pneg %p230
        $region38: #{tpu_custom_call.1} parent=11 // pred_check_branch
          %564 = sbr.rel (%p562) target = $region40
        $region39: #{tpu_custom_call.1} parent=11 // pred_region
          _
        $region40: #{tpu_custom_call.1} parent=11 // pred_fallthru
          _
        // Predicated region
        $region41: #{tpu_custom_call.1} parent=11 // pred_check
          %p565 = pneg %p251
        $region42: #{tpu_custom_call.1} parent=11 // pred_check_branch
          %567 = sbr.rel (%p565) target = $region44
        $region43: #{tpu_custom_call.1} parent=11 // pred_region
          _
        $region44: #{tpu_custom_call.1} parent=11 // pred_fallthru
          _
        // Predicated region
        $region45: #{tpu_custom_call.1} parent=11 // pred_check
          %p568 = pneg %p272
        $region46: #{tpu_custom_call.1} parent=11 // pred_check_branch
          %570 = sbr.rel (%p568) target = $region48
        $region47: #{tpu_custom_call.1} parent=11 // pred_region
          _
        $region48: #{tpu_custom_call.1} parent=11 // pred_fallthru
          _
        // Predicated region
        $region49: #{tpu_custom_call.1} parent=11 // pred_check
          %p571 = pneg %p293
        $region50: #{tpu_custom_call.1} parent=11 // pred_check_branch
          %573 = sbr.rel (%p571) target = $region52
        $region51: #{tpu_custom_call.1} parent=11 // pred_region
          _
        $region52: #{tpu_custom_call.1} parent=11 // pred_fallthru
          _
        // Predicated region
        $region53: #{tpu_custom_call.1} parent=11 // pred_check
          %p574 = pneg %p314
        $region54: #{tpu_custom_call.1} parent=11 // pred_check_branch
          %576 = sbr.rel (%p574) target = $region56
        $region55: #{tpu_custom_call.1} parent=11 // pred_region
          _
        $region56: #{tpu_custom_call.1} parent=11 // pred_fallthru
          _
        // Predicated region
        $region57: #{tpu_custom_call.1} parent=11 // pred_check
          %p577 = pneg %p335
        $region58: #{tpu_custom_call.1} parent=11 // pred_check_branch
          %579 = sbr.rel (%p577) target = $region60
        $region59: #{tpu_custom_call.1} parent=11 // pred_region
          _
        $region60: #{tpu_custom_call.1} parent=11 // pred_fallthru
          _
        // Predicated region
        $region61: #{tpu_custom_call.1} parent=11 // pred_check
          %p580 = pneg %p356
        $region62: #{tpu_custom_call.1} parent=11 // pred_check_branch
          %582 = sbr.rel (%p580) target = $region64
        $region63: #{tpu_custom_call.1} parent=11 // pred_region
          _
        $region64: #{tpu_custom_call.1} parent=11 // pred_fallthru
          _
        // Predicated region
        $region65: #{tpu_custom_call.1} parent=11 // pred_check
          %p583 = pneg %p377
        $region66: #{tpu_custom_call.1} parent=11 // pred_check_branch
          %585 = sbr.rel (%p583) target = $region68
        $region67: #{tpu_custom_call.1} parent=11 // pred_region
          _
        $region68: #{tpu_custom_call.1} parent=11 // pred_fallthru
          _
        // Predicated region
        $region69: #{tpu_custom_call.1} parent=11 // pred_check
          %p586 = pneg %p398
        $region70: #{tpu_custom_call.1} parent=11 // pred_check_branch
          %588 = sbr.rel (%p586) target = $region72
        $region71: #{tpu_custom_call.1} parent=11 // pred_region
          _
        $region72: #{tpu_custom_call.1} parent=11 // pred_fallthru
          _
        // Predicated region
        $region73: #{tpu_custom_call.1} parent=11 // pred_check
          %p589 = pneg %p419
        $region74: #{tpu_custom_call.1} parent=11 // pred_check_branch
          %591 = sbr.rel (%p589) target = $region76
        $region75: #{tpu_custom_call.1} parent=11 // pred_region
          _
        $region76: #{tpu_custom_call.1} parent=11 // pred_fallthru
          _
        // Predicated region
        $region77: #{tpu_custom_call.1} parent=11 // pred_check
          %p592 = pneg %p440
        $region78: #{tpu_custom_call.1} parent=11 // pred_check_branch
          %594 = sbr.rel (%p592) target = $region80
        $region79: #{tpu_custom_call.1} parent=11 // pred_region
          _
        $region80: #{tpu_custom_call.1} parent=11 // pred_fallthru
          _
        // Predicated region
        $region81: #{tpu_custom_call.1} parent=11 // pred_check
          %p595 = pneg %p461
        $region82: #{tpu_custom_call.1} parent=11 // pred_check_branch
          %597 = sbr.rel (%p595) target = $region84
        $region83: #{tpu_custom_call.1} parent=11 // pred_region
          _
        $region84: #{tpu_custom_call.1} parent=11 // pred_fallthru
          _
        // Predicated region
        $region85: #{tpu_custom_call.1} parent=11 // pred_check
          %p598 = pneg %p482
        $region86: #{tpu_custom_call.1} parent=11 // pred_check_branch
          %600 = sbr.rel (%p598) target = $region88
        $region87: #{tpu_custom_call.1} parent=11 // pred_region
          _
        $region88: #{tpu_custom_call.1} parent=11 // pred_fallthru
          _
        // Predicated region
        $region89: #{tpu_custom_call.1} parent=11 // pred_check
          %p601 = pneg %p503
        $region90: #{tpu_custom_call.1} parent=11 // pred_check_branch
          %603 = sbr.rel (%p601) target = $region92
        $region91: #{tpu_custom_call.1} parent=11 // pred_region
          _
        $region92: #{tpu_custom_call.1} parent=11 // pred_fallthru
          _
      $region12: #{tpu_custom_call.1} parent=5 // pred_fallthru
        _
      %p604 = scmp.lt.s32.totalorder %s31, 2
      // Predicated region
      $region93: #{tpu_custom_call.1} parent=5 // pred_check
        %p605 = pneg %p604
      $region94: #{tpu_custom_call.1} parent=5 // pred_check_branch
        %607 = sbr.rel (%p605) target = $region96
      $region95: #{tpu_custom_call.1} parent=5 // pred_region
        // Predicated region
        $region97: #{tpu_custom_call.1} parent=95 // pred_check
          %p608 = pneg %p51
        $region98: #{tpu_custom_call.1} parent=95 // pred_check_branch
          %610 = sbr.rel (%p608) target = $region100
        $region99: #{tpu_custom_call.1} parent=95 // pred_region
          %p611 = scmp.lt.s32.totalorder %s31, 1
          %s612 = scalar_select %p611, %s31, 1
          %s613 = smul.addr %s612, 8
          %s614 = scalar_lea.vmem %s0, %s613
        $region100: #{tpu_custom_call.1} parent=95 // pred_fallthru
          _
        // Predicated region
        $region101: #{tpu_custom_call.1} parent=95 // pred_check
          %p615 = pneg %p77
        $region102: #{tpu_custom_call.1} parent=95 // pred_check_branch
          %617 = sbr.rel (%p615) target = $region104
        $region103: #{tpu_custom_call.1} parent=95 // pred_region
          %p618 = scmp.lt.s32.totalorder %s31, 1
          %s619 = scalar_select %p618, %s31, 1
          %s620 = smul.addr %s619, 2
          %s621 = smul.addr %s620, 8
          %s622 = scalar_lea.vmem %s1, %s621
        $region104: #{tpu_custom_call.1} parent=95 // pred_fallthru
          _
      $region96: #{tpu_custom_call.1} parent=5 // pred_fallthru
        _
      %p623 = scmp.le.s32.totalorder 1, %s31
      %p624 = scmp.lt.s32.totalorder %s31, 3
      %p625 = pnand %p623, %p624
      %p626 = pneg %p625
      // Predicated region
      $region105: #{tpu_custom_call.1} parent=5 // pred_check
        _
      $region106: #{tpu_custom_call.1} parent=5 // pred_check_branch
        %628 = sbr.rel (%p625) target = $region108
      $region107: #{tpu_custom_call.1} parent=5 // pred_region
        %s629 = ssub.s32 %s31, 1
        %p630 = scmp.lt.s32.totalorder %s36, 1
        %s631 = scalar_select %p630, %s36, 1
        %s632 = smul.addr %s631, 8
        %s633 = scalar_lea.vmem %s0, %s632
        %p634 = pneg %p57
        %p635 = pneg %p54
        %p636 = scmp.lt.s32.totalorder %s36, 1
        %s637 = scalar_select %p636, %s36, 1
        %s638 = smul.addr %s637, 2
        %s639 = smul.addr %s638, 8
        %s640 = scalar_lea.vmem %s1, %s639
        %p641 = pneg %p83
        %p642 = pneg %p80
        %p643 = pneg %p104
        %p644 = pneg %p101
        %p645 = pneg %p125
        %p646 = pneg %p122
        %p647 = pneg %p146
        %p648 = pneg %p143
        %p649 = pneg %p167
        %p650 = pneg %p164
        %p651 = pneg %p188
        %p652 = pneg %p185
        %p653 = pneg %p209
        %p654 = pneg %p206
        %p655 = pneg %p230
        %p656 = pneg %p227
        %p657 = pneg %p251
        %p658 = pneg %p248
        %p659 = pneg %p272
        %p660 = pneg %p269
        %p661 = pneg %p293
        %p662 = pneg %p290
        %p663 = pneg %p314
        %p664 = pneg %p311
        %p665 = pneg %p335
        %p666 = pneg %p332
        %p667 = pneg %p356
        %p668 = pneg %p353
        %p669 = pneg %p377
        %p670 = pneg %p374
        %p671 = pneg %p398
        %p672 = pneg %p395
        %p673 = pneg %p419
        %p674 = pneg %p416
        %p675 = pneg %p440
        %p676 = pneg %p437
        %p677 = pneg %p461
        %p678 = pneg %p458
        %p679 = pneg %p482
        %p680 = pneg %p479
        %p681 = pneg %p503
        %p682 = pneg %p500
        %p683 = pneg %p529
        %p684 = pneg %p526
        %s685 = sand.u32 %s516, 1
        %s686 = scalar_lea.sflag [#allocation3], %s685
        %s687 = sand.u32 %s516, 1
        %s688 = smul.addr %s687, 8
        %s689 = scalar_lea.vmem [#allocation2], %s688
        %p690 = scmp.lt.s32.totalorder %s36, 1
        %s691 = scalar_select %p690, %s36, 1
        %s692 = smul.addr %s691, 8
        %s693 = scalar_lea.vmem %s0, %s692
        %p694 = scmp.lt.s32.totalorder %s36, 1
        %s695 = scalar_select %p694, %s36, 1
        %s696 = smul.addr %s695, 2
        %s697 = smul.addr %s696, 8
        %s698 = scalar_lea.vmem %s1, %s697
        %v700 = vld [vmem:[%s693] sm:$0xff]
        %v701 = vld [vmem:[%s698] sm:$0xff]
        %v702 = vld [vmem:[%s698 + $0x8] sm:$0xf]
        %v703 = vpack.c.bf16 %v700, %v700
        %v704 = vld [vmem:[%s2] sm:$0xf]
        %v705 = vld [vmem:[%s2 + $0x4] sm:$0xf]
        %v706 = vld [vmem:[%s2 + $0x8] sm:$0xf]
        %v707 = vld [vmem:[%s2 + $0xc] sm:$0xf]
        %v708 = vld [vmem:[%s3] sm:$0x1]
        %v710 = vlaneseq
        %v711 = vshrl.u32 %v710, 7
        %v712 = vsub.s32 0, %v711
        %v713 = vrot.slane %v708, %v712
        %v719 = vunpack.c.l.b16 %v704
        %v720 = vunpack.c.l.b16 %v705
        %v721 = vunpack.c.l.b16 %v706
        %v722 = vunpack.c.l.b16 %v707
        %v723 = vpack.c.b16 %v720, %v719
        %v724 = vpack.c.b16 %v722, %v721
        %vm727 = vcmask 261120
        %v729 = vsel %vm727, %v703, 0
        %731 = vmatprep.subr.bf16.mxu0 0
        %732 = vmatpush1.bf16.msra.mxu0 %v723
        %733 = vmatprep.subr.bf16.mxu0 0
        %734 = vmatpush1.bf16.msra.mxu0 %v724
        %735 = vmatprep.subr.bf16.mxu0 0
        %736 = vmatpush1.bf16.msra.mxu0 0
        %737 = vmatprep.subr.bf16.mxu0 0
        %738 = vmatpush1.bf16.msra.mxu0 0
        %739 = vmatprep.subr.bf16.mxu0 0
        %740 = vmatpush1.bf16.msra.mxu0 0
        %741 = vmatprep.subr.bf16.mxu0 0
        %742 = vmatpush1.bf16.msra.mxu0 0
        %743 = vmatprep.subr.bf16.mxu0 0
        %744 = vmatpush1.bf16.msra.mxu0 0
        %745 = vmatprep.subr.bf16.mxu0 0
        %746 = vmatpush1.bf16.msra.mxu0 0
        %747 = vmatprep.subr.bf16.mxu0 0
        %748 = vmatpush1.bf16.msra.mxu0 0
        %749 = vmatprep.subr.bf16.mxu0 0
        %750 = vmatpush1.bf16.msra.mxu0 0
        %751 = vmatprep.subr.bf16.mxu0 0
        %752 = vmatpush1.bf16.msra.mxu0 0
        %753 = vmatprep.subr.bf16.mxu0 0
        %754 = vmatpush1.bf16.msra.mxu0 0
        %755 = vmatprep.subr.bf16.mxu0 0
        %756 = vmatpush1.bf16.msra.mxu0 0
        %757 = vmatprep.subr.bf16.mxu0 0
        %758 = vmatpush1.bf16.msra.mxu0 0
        %759 = vmatprep.subr.bf16.mxu0 0
        %760 = vmatpush1.bf16.msra.mxu0 0
        %761 = vmatprep.subr.bf16.mxu0 0
        %762 = vmatpush1.bf16.msra.mxu0 0
        %763 = vmatprep.mubr.bf16.mxu0 0
        %764 = vmatmul.mubr.bf16.gmra.mrb[0].mxu0 %v729
        %v765 = vpop.f32.mrb[0].mxu0
        %v766 = vadd.f32 %v713, %v765
        %v767 = vpop.f32.mrb[0].mxu0
        %v768 = vpop.f32.mrb[0].mxu0
        %v769 = vpop.f32.mrb[0].mxu0
        %770 = vdwg.mxu0
        %v771 = vmul.f32 %v766, 0.35355338
        %v772 = vpack.c.bf16 %v771, %v771
        %v773 = vpack.c.bf16 %v766, %v766
        %v774 = vlaneseq
        %v775 = vshrl.u32 %v774, 7
        %v776 = vlaneseq
        %v777 = vand.u32 %v776, 127
        %vm778 = vcmp.le.s32.totalorder %v777, %v775
        %780 = vrot.lane.b32.xlu0 %v773, 96
        %v781 = vpop.permute.xlu0 %780
        %vm782 = vcmask 64512
        %v784 = vsel %vm782, %v772, 0
        %v787 = vsel %vm782, %v781, 0
        %789 = vmatprep.subr.bf16.mxu0 0
        %790 = vmatpush1.bf16.xpose.msra.mxu0 %v787
        %791 = vmatprep.subr.bf16.mxu0 0
        %792 = vmatpush1.bf16.xpose.msra.mxu0 0
        %793 = vmatprep.subr.bf16.mxu0 0
        %794 = vmatpush1.bf16.xpose.msra.mxu0 0
        %795 = vmatprep.subr.bf16.mxu0 0
        %796 = vmatpush1.bf16.xpose.msra.mxu0 0
        %797 = vmatprep.subr.bf16.mxu0 0
        %798 = vmatpush1.bf16.xpose.msra.mxu0 0
        %799 = vmatprep.subr.bf16.mxu0 0
        %800 = vmatpush1.bf16.xpose.msra.mxu0 0
        %801 = vmatprep.subr.bf16.mxu0 0
        %802 = vmatpush1.bf16.xpose.msra.mxu0 0
        %803 = vmatprep.subr.bf16.mxu0 0
        %804 = vmatpush1.bf16.xpose.msra.mxu0 0
        %805 = vmatprep.subr.bf16.mxu0 0
        %806 = vmatpush1.bf16.xpose.msra.mxu0 0
        %807 = vmatprep.subr.bf16.mxu0 0
        %808 = vmatpush1.bf16.xpose.msra.mxu0 0
        %809 = vmatprep.subr.bf16.mxu0 0
        %810 = vmatpush1.bf16.xpose.msra.mxu0 0
        %811 = vmatprep.subr.bf16.mxu0 0
        %812 = vmatpush1.bf16.xpose.msra.mxu0 0
        %813 = vmatprep.subr.bf16.mxu0 0
        %814 = vmatpush1.bf16.xpose.msra.mxu0 0
        %815 = vmatprep.subr.bf16.mxu0 0
        %816 = vmatpush1.bf16.xpose.msra.mxu0 0
        %817 = vmatprep.subr.bf16.mxu0 0
        %818 = vmatpush1.bf16.xpose.msra.mxu0 0
        %819 = vmatprep.subr.bf16.mxu0 0
        %820 = vmatpush1.bf16.xpose.msra.mxu0 0
        %821 = vmatprep.mubr.bf16.mxu0 0
        %822 = vmatmul.mubr.bf16.gmra.mrb[0].mxu0 %v784
        %v823 = vpop.f32.mrb[0].mxu0
        %v824 = vadd.f32 0.0, %v823
        %v825 = vpop.f32.mrb[0].mxu0
        %v826 = vpop.f32.mrb[0].mxu0
        %v827 = vpop.f32.mrb[0].mxu0
        %828 = vdwg.mxu0
        %v829 = vsel %vm778, %v824, -1e+30
        %v830 = vsel %vm782, %v829, -inf
        %831 = vmax.xlane.f32.xlu0 %v830
        %v832 = vpop.xlane.xlu0 %831
        %v833 = vsub.f32 %v829, %v832
        %v834 = vmul.f32 %v833, 1.442695
        %v835 = vpow.pop %v834
        %v836 = vsel %vm782, %v835, 0.0
        %837 = vadd.xlane.f32.xlu0 %v836
        %v838 = vpop.xlane.xlu0 %837
        %v839 = vrcp.pop %v838
        %v840 = vmul.f32 %v835, %v839
        %v841 = vpack.c.bf16 %v840, %v840
        %842 = vrot.lane.b32.xlu0 %v773, 64
        %v843 = vpop.permute.xlu0 %842
        %v845 = vsel %vm782, %v841, 0
        %vm847 = vcmask 1043456
        %v849 = vsel %vm847, %v843, 0
        %851 = vmatprep.subr.bf16.mxu0 0
        %852 = vmatpush1.bf16.msra.mxu0 %v849
        %853 = vmatprep.subr.bf16.mxu0 0
        %854 = vmatpush1.bf16.msra.mxu0 0
        %855 = vmatprep.subr.bf16.mxu0 0
        %856 = vmatpush1.bf16.msra.mxu0 0
        %857 = vmatprep.subr.bf16.mxu0 0
        %858 = vmatpush1.bf16.msra.mxu0 0
        %859 = vmatprep.subr.bf16.mxu0 0
        %860 = vmatpush1.bf16.msra.mxu0 0
        %861 = vmatprep.subr.bf16.mxu0 0
        %862 = vmatpush1.bf16.msra.mxu0 0
        %863 = vmatprep.subr.bf16.mxu0 0
        %864 = vmatpush1.bf16.msra.mxu0 0
        %865 = vmatprep.subr.bf16.mxu0 0
        %866 = vmatpush1.bf16.msra.mxu0 0
        %867 = vmatprep.subr.bf16.mxu0 0
        %868 = vmatpush1.bf16.msra.mxu0 0
        %869 = vmatprep.subr.bf16.mxu0 0
        %870 = vmatpush1.bf16.msra.mxu0 0
        %871 = vmatprep.subr.bf16.mxu0 0
        %872 = vmatpush1.bf16.msra.mxu0 0
        %873 = vmatprep.subr.bf16.mxu0 0
        %874 = vmatpush1.bf16.msra.mxu0 0
        %875 = vmatprep.subr.bf16.mxu0 0
        %876 = vmatpush1.bf16.msra.mxu0 0
        %877 = vmatprep.subr.bf16.mxu0 0
        %878 = vmatpush1.bf16.msra.mxu0 0
        %879 = vmatprep.subr.bf16.mxu0 0
        %880 = vmatpush1.bf16.msra.mxu0 0
        %881 = vmatprep.subr.bf16.mxu0 0
        %882 = vmatpush1.bf16.msra.mxu0 0
        %883 = vmatprep.mubr.bf16.mxu0 0
        %884 = vmatmul.mubr.bf16.gmra.mrb[0].mxu0 %v845
        %v885 = vpop.f32.mrb[0].mxu0
        %v886 = vadd.f32 0.0, %v885
        %v887 = vpop.f32.mrb[0].mxu0
        %v888 = vpop.f32.mrb[0].mxu0
        %v889 = vpop.f32.mrb[0].mxu0
        %890 = vdwg.mxu0
        %892 = vrot.lane.b32.xlu0 %v772, 120
        %v893 = vpop.permute.xlu0 %892
        %894 = vrot.lane.b32.xlu0 %v773, 88
        %v895 = vpop.permute.xlu0 %894
        %v897 = vsel %vm782, %v893, 0
        %v900 = vsel %vm782, %v895, 0
        %902 = vmatprep.subr.bf16.mxu0 0
        %903 = vmatpush1.bf16.xpose.msra.mxu0 %v900
        %904 = vmatprep.subr.bf16.mxu0 0
        %905 = vmatpush1.bf16.xpose.msra.mxu0 0
        %906 = vmatprep.subr.bf16.mxu0 0
        %907 = vmatpush1.bf16.xpose.msra.mxu0 0
        %908 = vmatprep.subr.bf16.mxu0 0
        %909 = vmatpush1.bf16.xpose.msra.mxu0 0
        %910 = vmatprep.subr.bf16.mxu0 0
        %911 = vmatpush1.bf16.xpose.msra.mxu0 0
        %912 = vmatprep.subr.bf16.mxu0 0
        %913 = vmatpush1.bf16.xpose.msra.mxu0 0
        %914 = vmatprep.subr.bf16.mxu0 0
        %915 = vmatpush1.bf16.xpose.msra.mxu0 0
        %916 = vmatprep.subr.bf16.mxu0 0
        %917 = vmatpush1.bf16.xpose.msra.mxu0 0
        %918 = vmatprep.subr.bf16.mxu0 0
        %919 = vmatpush1.bf16.xpose.msra.mxu0 0
        %920 = vmatprep.subr.bf16.mxu0 0
        %921 = vmatpush1.bf16.xpose.msra.mxu0 0
        %922 = vmatprep.subr.bf16.mxu0 0
        %923 = vmatpush1.bf16.xpose.msra.mxu0 0
        %924 = vmatprep.subr.bf16.mxu0 0
        %925 = vmatpush1.bf16.xpose.msra.mxu0 0
        %926 = vmatprep.subr.bf16.mxu0 0
        %927 = vmatpush1.bf16.xpose.msra.mxu0 0
        %928 = vmatprep.subr.bf16.mxu0 0
        %929 = vmatpush1.bf16.xpose.msra.mxu0 0
        %930 = vmatprep.subr.bf16.mxu0 0
        %931 = vmatpush1.bf16.xpose.msra.mxu0 0
        %932 = vmatprep.subr.bf16.mxu0 0
        %933 = vmatpush1.bf16.xpose.msra.mxu0 0
        %934 = vmatprep.mubr.bf16.mxu0 0
        %935 = vmatmul.mubr.bf16.gmra.mrb[0].mxu0 %v897
        %v936 = vpop.f32.mrb[0].mxu0
        %v937 = vadd.f32 0.0, %v936
        %v938 = vpop.f32.mrb[0].mxu0
        %v939 = vpop.f32.mrb[0].mxu0
        %v940 = vpop.f32.mrb[0].mxu0
        %941 = vdwg.mxu0
        %v942 = vsel %vm778, %v937, -1e+30
        %v943 = vsel %vm782, %v942, -inf
        %944 = vmax.xlane.f32.xlu0 %v943
        %v945 = vpop.xlane.xlu0 %944
        %v946 = vsub.f32 %v942, %v945
        %v947 = vmul.f32 %v946, 1.442695
        %v948 = vpow.pop %v947
        %v949 = vsel %vm782, %v948, 0.0
        %950 = vadd.xlane.f32.xlu0 %v949
        %v951 = vpop.xlane.xlu0 %950
        %v952 = vrcp.pop %v951
        %v953 = vmul.f32 %v948, %v952
        %v954 = vpack.c.bf16 %v953, %v953
        %955 = vrot.lane.b32.xlu0 %v773, 56
        %v956 = vpop.permute.xlu0 %955
        %v958 = vsel %vm782, %v954, 0
        %v961 = vsel %vm847, %v956, 0
        %963 = vmatprep.subr.bf16.mxu0 0
        %964 = vmatpush1.bf16.msra.mxu0 %v961
        %965 = vmatprep.subr.bf16.mxu0 0
        %966 = vmatpush1.bf16.msra.mxu0 0
        %967 = vmatprep.subr.bf16.mxu0 0
        %968 = vmatpush1.bf16.msra.mxu0 0
        %969 = vmatprep.subr.bf16.mxu0 0
        %970 = vmatpush1.bf16.msra.mxu0 0
        %971 = vmatprep.subr.bf16.mxu0 0
        %972 = vmatpush1.bf16.msra.mxu0 0
        %973 = vmatprep.subr.bf16.mxu0 0
        %974 = vmatpush1.bf16.msra.mxu0 0
        %975 = vmatprep.subr.bf16.mxu0 0
        %976 = vmatpush1.bf16.msra.mxu0 0
        %977 = vmatprep.subr.bf16.mxu0 0
        %978 = vmatpush1.bf16.msra.mxu0 0
        %979 = vmatprep.subr.bf16.mxu0 0
        %980 = vmatpush1.bf16.msra.mxu0 0
        %981 = vmatprep.subr.bf16.mxu0 0
        %982 = vmatpush1.bf16.msra.mxu0 0
        %983 = vmatprep.subr.bf16.mxu0 0
        %984 = vmatpush1.bf16.msra.mxu0 0
        %985 = vmatprep.subr.bf16.mxu0 0
        %986 = vmatpush1.bf16.msra.mxu0 0
        %987 = vmatprep.subr.bf16.mxu0 0
        %988 = vmatpush1.bf16.msra.mxu0 0
        %989 = vmatprep.subr.bf16.mxu0 0
        %990 = vmatpush1.bf16.msra.mxu0 0
        %991 = vmatprep.subr.bf16.mxu0 0
        %992 = vmatpush1.bf16.msra.mxu0 0
        %993 = vmatprep.subr.bf16.mxu0 0
        %994 = vmatpush1.bf16.msra.mxu0 0
        %995 = vmatprep.mubr.bf16.mxu0 0
        %996 = vmatmul.mubr.bf16.gmra.mrb[0].mxu0 %v958
        %v997 = vpop.f32.mrb[0].mxu0
        %v998 = vadd.f32 0.0, %v997
        %v999 = vpop.f32.mrb[0].mxu0
        %v1000 = vpop.f32.mrb[0].mxu0
        %v1001 = vpop.f32.mrb[0].mxu0
        %1002 = vdwg.mxu0
        %1003 = vrot.lane.b32.xlu0 %v772, 112
        %v1004 = vpop.permute.xlu0 %1003
        %1005 = vrot.lane.b32.xlu0 %v773, 80
        %v1006 = vpop.permute.xlu0 %1005
        %v1008 = vsel %vm782, %v1004, 0
        %v1011 = vsel %vm782, %v1006, 0
        %1013 = vmatprep.subr.bf16.mxu0 0
        %1014 = vmatpush1.bf16.xpose.msra.mxu0 %v1011
        %1015 = vmatprep.subr.bf16.mxu0 0
        %1016 = vmatpush1.bf16.xpose.msra.mxu0 0
        %1017 = vmatprep.subr.bf16.mxu0 0
        %1018 = vmatpush1.bf16.xpose.msra.mxu0 0
        %1019 = vmatprep.subr.bf16.mxu0 0
        %1020 = vmatpush1.bf16.xpose.msra.mxu0 0
        %1021 = vmatprep.subr.bf16.mxu0 0
        %1022 = vmatpush1.bf16.xpose.msra.mxu0 0
        %1023 = vmatprep.subr.bf16.mxu0 0
        %1024 = vmatpush1.bf16.xpose.msra.mxu0 0
        %1025 = vmatprep.subr.bf16.mxu0 0
        %1026 = vmatpush1.bf16.xpose.msra.mxu0 0
        %1027 = vmatprep.subr.bf16.mxu0 0
        %1028 = vmatpush1.bf16.xpose.msra.mxu0 0
        %1029 = vmatprep.subr.bf16.mxu0 0
        %1030 = vmatpush1.bf16.xpose.msra.mxu0 0
        %1031 = vmatprep.subr.bf16.mxu0 0
        %1032 = vmatpush1.bf16.xpose.msra.mxu0 0
        %1033 = vmatprep.subr.bf16.mxu0 0
        %1034 = vmatpush1.bf16.xpose.msra.mxu0 0
        %1035 = vmatprep.subr.bf16.mxu0 0
        %1036 = vmatpush1.bf16.xpose.msra.mxu0 0
        %1037 = vmatprep.subr.bf16.mxu0 0
        %1038 = vmatpush1.bf16.xpose.msra.mxu0 0
        %1039 = vmatprep.subr.bf16.mxu0 0
        %1040 = vmatpush1.bf16.xpose.msra.mxu0 0
        %1041 = vmatprep.subr.bf16.mxu0 0
        %1042 = vmatpush1.bf16.xpose.msra.mxu0 0
        %1043 = vmatprep.subr.bf16.mxu0 0
        %1044 = vmatpush1.bf16.xpose.msra.mxu0 0
        %1045 = vmatprep.mubr.bf16.mxu0 0
        %1046 = vmatmul.mubr.bf16.gmra.mrb[0].mxu0 %v1008
        %v1047 = vpop.f32.mrb[0].mxu0
        %v1048 = vadd.f32 0.0, %v1047
        %v1049 = vpop.f32.mrb[0].mxu0
        %v1050 = vpop.f32.mrb[0].mxu0
        %v1051 = vpop.f32.mrb[0].mxu0
        %1052 = vdwg.mxu0
        %v1053 = vsel %vm778, %v1048, -1e+30
        %v1054 = vsel %vm782, %v1053, -inf
        %1055 = vmax.xlane.f32.xlu0 %v1054
        %v1056 = vpop.xlane.xlu0 %1055
        %v1057 = vsub.f32 %v1053, %v1056
        %v1058 = vmul.f32 %v1057, 1.442695
        %v1059 = vpow.pop %v1058
        %v1060 = vsel %vm782, %v1059, 0.0
        %1061 = vadd.xlane.f32.xlu0 %v1060
        %v1062 = vpop.xlane.xlu0 %1061
        %v1063 = vrcp.pop %v1062
        %v1064 = vmul.f32 %v1059, %v1063
        %v1065 = vpack.c.bf16 %v1064, %v1064
        %1066 = vrot.lane.b32.xlu0 %v773, 48
        %v1067 = vpop.permute.xlu0 %1066
        %v1069 = vsel %vm782, %v1065, 0
        %v1072 = vsel %vm847, %v1067, 0
        %1074 = vmatprep.subr.bf16.mxu0 0
        %1075 = vmatpush1.bf16.msra.mxu0 %v1072
        %1076 = vmatprep.subr.bf16.mxu0 0
        %1077 = vmatpush1.bf16.msra.mxu0 0
        %1078 = vmatprep.subr.bf16.mxu0 0
        %1079 = vmatpush1.bf16.msra.mxu0 0
        %1080 = vmatprep.subr.bf16.mxu0 0
        %1081 = vmatpush1.bf16.msra.mxu0 0
        %1082 = vmatprep.subr.bf16.mxu0 0
        %1083 = vmatpush1.bf16.msra.mxu0 0
        %1084 = vmatprep.subr.bf16.mxu0 0
        %1085 = vmatpush1.bf16.msra.mxu0 0
        %1086 = vmatprep.subr.bf16.mxu0 0
        %1087 = vmatpush1.bf16.msra.mxu0 0
        %1088 = vmatprep.subr.bf16.mxu0 0
        %1089 = vmatpush1.bf16.msra.mxu0 0
        %1090 = vmatprep.subr.bf16.mxu0 0
        %1091 = vmatpush1.bf16.msra.mxu0 0
        %1092 = vmatprep.subr.bf16.mxu0 0
        %1093 = vmatpush1.bf16.msra.mxu0 0
        %1094 = vmatprep.subr.bf16.mxu0 0
        %1095 = vmatpush1.bf16.msra.mxu0 0
        %1096 = vmatprep.subr.bf16.mxu0 0
        %1097 = vmatpush1.bf16.msra.mxu0 0
        %1098 = vmatprep.subr.bf16.mxu0 0
        %1099 = vmatpush1.bf16.msra.mxu0 0
        %1100 = vmatprep.subr.bf16.mxu0 0
        %1101 = vmatpush1.bf16.msra.mxu0 0
        %1102 = vmatprep.subr.bf16.mxu0 0
        %1103 = vmatpush1.bf16.msra.mxu0 0
        %1104 = vmatprep.subr.bf16.mxu0 0
        %1105 = vmatpush1.bf16.msra.mxu0 0
        %1106 = vmatprep.mubr.bf16.mxu0 0
        %1107 = vmatmul.mubr.bf16.gmra.mrb[0].mxu0 %v1069
        %v1108 = vpop.f32.mrb[0].mxu0
        %v1109 = vadd.f32 0.0, %v1108
        %v1110 = vpop.f32.mrb[0].mxu0
        %v1111 = vpop.f32.mrb[0].mxu0
        %v1112 = vpop.f32.mrb[0].mxu0
        %1113 = vdwg.mxu0
        %1114 = vrot.lane.b32.xlu0 %v772, 104
        %v1115 = vpop.permute.xlu0 %1114
        %1116 = vrot.lane.b32.xlu0 %v773, 72
        %v1117 = vpop.permute.xlu0 %1116
        %v1119 = vsel %vm782, %v1115, 0
        %v1122 = vsel %vm782, %v1117, 0
        %1124 = vmatprep.subr.bf16.mxu0 0
        %1125 = vmatpush1.bf16.xpose.msra.mxu0 %v1122
        %1126 = vmatprep.subr.bf16.mxu0 0
        %1127 = vmatpush1.bf16.xpose.msra.mxu0 0
        %1128 = vmatprep.subr.bf16.mxu0 0
        %1129 = vmatpush1.bf16.xpose.msra.mxu0 0
        %1130 = vmatprep.subr.bf16.mxu0 0
        %1131 = vmatpush1.bf16.xpose.msra.mxu0 0
        %1132 = vmatprep.subr.bf16.mxu0 0
        %1133 = vmatpush1.bf16.xpose.msra.mxu0 0
        %1134 = vmatprep.subr.bf16.mxu0 0
        %1135 = vmatpush1.bf16.xpose.msra.mxu0 0
        %1136 = vmatprep.subr.bf16.mxu0 0
        %1137 = vmatpush1.bf16.xpose.msra.mxu0 0
        %1138 = vmatprep.subr.bf16.mxu0 0
        %1139 = vmatpush1.bf16.xpose.msra.mxu0 0
        %1140 = vmatprep.subr.bf16.mxu0 0
        %1141 = vmatpush1.bf16.xpose.msra.mxu0 0
        %1142 = vmatprep.subr.bf16.mxu0 0
        %1143 = vmatpush1.bf16.xpose.msra.mxu0 0
        %1144 = vmatprep.subr.bf16.mxu0 0
        %1145 = vmatpush1.bf16.xpose.msra.mxu0 0
        %1146 = vmatprep.subr.bf16.mxu0 0
        %1147 = vmatpush1.bf16.xpose.msra.mxu0 0
        %1148 = vmatprep.subr.bf16.mxu0 0
        %1149 = vmatpush1.bf16.xpose.msra.mxu0 0
        %1150 = vmatprep.subr.bf16.mxu0 0
        %1151 = vmatpush1.bf16.xpose.msra.mxu0 0
        %1152 = vmatprep.subr.bf16.mxu0 0
        %1153 = vmatpush1.bf16.xpose.msra.mxu0 0
        %1154 = vmatprep.subr.bf16.mxu0 0
        %1155 = vmatpush1.bf16.xpose.msra.mxu0 0
        %1156 = vmatprep.mubr.bf16.mxu0 0
        %1157 = vmatmul.mubr.bf16.gmra.mrb[0].mxu0 %v1119
        %v1158 = vpop.f32.mrb[0].mxu0
        %v1159 = vadd.f32 0.0, %v1158
        %v1160 = vpop.f32.mrb[0].mxu0
        %v1161 = vpop.f32.mrb[0].mxu0
        %v1162 = vpop.f32.mrb[0].mxu0
        %1163 = vdwg.mxu0
        %v1164 = vsel %vm778, %v1159, -1e+30
        %v1165 = vsel %vm782, %v1164, -inf
        %1166 = vmax.xlane.f32.xlu0 %v1165
        %v1167 = vpop.xlane.xlu0 %1166
        %v1168 = vsub.f32 %v1164, %v1167
        %v1169 = vmul.f32 %v1168, 1.442695
        %v1170 = vpow.pop %v1169
        %v1171 = vsel %vm782, %v1170, 0.0
        %1172 = vadd.xlane.f32.xlu0 %v1171
        %v1173 = vpop.xlane.xlu0 %1172
        %v1174 = vrcp.pop %v1173
        %v1175 = vmul.f32 %v1170, %v1174
        %v1176 = vpack.c.bf16 %v1175, %v1175
        %1177 = vrot.lane.b32.xlu0 %v773, 40
        %v1178 = vpop.permute.xlu0 %1177
        %v1180 = vsel %vm782, %v1176, 0
        %v1183 = vsel %vm847, %v1178, 0
        %1185 = vmatprep.subr.bf16.mxu0 0
        %1186 = vmatpush1.bf16.msra.mxu0 %v1183
        %1187 = vmatprep.subr.bf16.mxu0 0
        %1188 = vmatpush1.bf16.msra.mxu0 0
        %1189 = vmatprep.subr.bf16.mxu0 0
        %1190 = vmatpush1.bf16.msra.mxu0 0
        %1191 = vmatprep.subr.bf16.mxu0 0
        %1192 = vmatpush1.bf16.msra.mxu0 0
        %1193 = vmatprep.subr.bf16.mxu0 0
        %1194 = vmatpush1.bf16.msra.mxu0 0
        %1195 = vmatprep.subr.bf16.mxu0 0
        %1196 = vmatpush1.bf16.msra.mxu0 0
        %1197 = vmatprep.subr.bf16.mxu0 0
        %1198 = vmatpush1.bf16.msra.mxu0 0
        %1199 = vmatprep.subr.bf16.mxu0 0
        %1200 = vmatpush1.bf16.msra.mxu0 0
        %1201 = vmatprep.subr.bf16.mxu0 0
        %1202 = vmatpush1.bf16.msra.mxu0 0
        %1203 = vmatprep.subr.bf16.mxu0 0
        %1204 = vmatpush1.bf16.msra.mxu0 0
        %1205 = vmatprep.subr.bf16.mxu0 0
        %1206 = vmatpush1.bf16.msra.mxu0 0
        %1207 = vmatprep.subr.bf16.mxu0 0
        %1208 = vmatpush1.bf16.msra.mxu0 0
        %1209 = vmatprep.subr.bf16.mxu0 0
        %1210 = vmatpush1.bf16.msra.mxu0 0
        %1211 = vmatprep.subr.bf16.mxu0 0
        %1212 = vmatpush1.bf16.msra.mxu0 0
        %1213 = vmatprep.subr.bf16.mxu0 0
        %1214 = vmatpush1.bf16.msra.mxu0 0
        %1215 = vmatprep.subr.bf16.mxu0 0
        %1216 = vmatpush1.bf16.msra.mxu0 0
        %1217 = vmatprep.mubr.bf16.mxu0 0
        %1218 = vmatmul.mubr.bf16.gmra.mrb[0].mxu0 %v1180
        %v1219 = vpop.f32.mrb[0].mxu0
        %v1220 = vadd.f32 0.0, %v1219
        %v1221 = vpop.f32.mrb[0].mxu0
        %v1222 = vpop.f32.mrb[0].mxu0
        %v1223 = vpop.f32.mrb[0].mxu0
        %1224 = vdwg.mxu0
        %1226 = vrot.lane.b32.xlu0 %v998, 8
        %v1227 = vpop.permute.xlu0 %1226
        %1230 = vrot.lane.b32.xlu0 %v1109, 16
        %v1231 = vpop.permute.xlu0 %1230
        %1234 = vrot.lane.b32.xlu0 %v1220, 24
        %v1235 = vpop.permute.xlu0 %1234
        %v1237 = vsel %vm782, %v886, %v1227
        %vm1238 = vcmask 130048
        %v1239 = vsel %vm1238, %v1237, %v1231
        %vm1240 = vcmask 195584
        %v1241 = vsel %vm1240, %v1239, %v1235
        %v1242 = vpack.c.bf16 %v1241, %v1241
        %v1243 = vld [vmem:[%s4] sm:$0xf]
        %v1244 = vld [vmem:[%s4 + $0x4] sm:$0xf]
        %v1245 = vld [vmem:[%s4 + $0x8] sm:$0xf]
        %v1246 = vld [vmem:[%s4 + $0xc] sm:$0xf]
        %v1247 = vld [vmem:[%s5] sm:$0x1]
        %v1249 = vlaneseq
        %v1250 = vshrl.u32 %v1249, 7
        %v1251 = vsub.s32 0, %v1250
        %v1252 = vrot.slane %v1247, %v1251
        %v1258 = vunpack.c.l.b16 %v1243
        %v1259 = vunpack.c.l.b16 %v1244
        %v1260 = vunpack.c.l.b16 %v1245
        %v1261 = vunpack.c.l.b16 %v1246
        %v1262 = vpack.c.b16 %v1259, %v1258
        %v1263 = vpack.c.b16 %v1261, %v1260
        %v1267 = vsel %vm727, %v1242, 0
        %1269 = vmatprep.subr.bf16.mxu0 0
        %1270 = vmatpush1.bf16.msra.mxu0 %v1262
        %1271 = vmatprep.subr.bf16.mxu0 0
        %1272 = vmatpush1.bf16.msra.mxu0 %v1263
        %1273 = vmatprep.subr.bf16.mxu0 0
        %1274 = vmatpush1.bf16.msra.mxu0 0
        %1275 = vmatprep.subr.bf16.mxu0 0
        %1276 = vmatpush1.bf16.msra.mxu0 0
        %1277 = vmatprep.subr.bf16.mxu0 0
        %1278 = vmatpush1.bf16.msra.mxu0 0
        %1279 = vmatprep.subr.bf16.mxu0 0
        %1280 = vmatpush1.bf16.msra.mxu0 0
        %1281 = vmatprep.subr.bf16.mxu0 0
        %1282 = vmatpush1.bf16.msra.mxu0 0
        %1283 = vmatprep.subr.bf16.mxu0 0
        %1284 = vmatpush1.bf16.msra.mxu0 0
        %1285 = vmatprep.subr.bf16.mxu0 0
        %1286 = vmatpush1.bf16.msra.mxu0 0
        %1287 = vmatprep.subr.bf16.mxu0 0
        %1288 = vmatpush1.bf16.msra.mxu0 0
        %1289 = vmatprep.subr.bf16.mxu0 0
        %1290 = vmatpush1.bf16.msra.mxu0 0
        %1291 = vmatprep.subr.bf16.mxu0 0
        %1292 = vmatpush1.bf16.msra.mxu0 0
        %1293 = vmatprep.subr.bf16.mxu0 0
        %1294 = vmatpush1.bf16.msra.mxu0 0
        %1295 = vmatprep.subr.bf16.mxu0 0
        %1296 = vmatpush1.bf16.msra.mxu0 0
        %1297 = vmatprep.subr.bf16.mxu0 0
        %1298 = vmatpush1.bf16.msra.mxu0 0
        %1299 = vmatprep.subr.bf16.mxu0 0
        %1300 = vmatpush1.bf16.msra.mxu0 0
        %1301 = vmatprep.mubr.bf16.mxu0 0
        %1302 = vmatmul.mubr.bf16.gmra.mrb[0].mxu0 %v1267
        %v1303 = vpop.f32.mrb[0].mxu0
        %v1304 = vadd.f32 %v1252, %v1303
        %v1305 = vpop.f32.mrb[0].mxu0
        %v1306 = vpop.f32.mrb[0].mxu0
        %v1307 = vpop.f32.mrb[0].mxu0
        %1308 = vdwg.mxu0
        %v1309 = vld [vmem:[%s16] sm:$0x1]
        %v1310 = vld [vmem:[%s17] sm:$0x1]
        %v1311 = vadd.f32 %v700, %v1304
        %v1312 = vsel %vm727, %v1311, 0.0
        %1313 = vadd.xlane.f32.xlu0 %v1312
        %v1314 = vpop.xlane.xlu0 %1313
        %v1315 = vrcp.pop 32.0
        %v1316 = vmul.f32 %v1314, %v1315
        %v1317 = vsub.f32 %v1311, %v1316
        %v1318 = vmul.f32 %v1317, %v1317
        %v1319 = vsel %vm727, %v1318, 0.0
        %1320 = vadd.xlane.f32.xlu0 %v1319
        %v1321 = vpop.xlane.xlu0 %1320
        %v1322 = vmul.f32 %v1321, %v1315
        %v1323 = vadd.f32 %v1322, 1e-05
        %v1324 = vrsqrt.pop %v1323
        %v1325 = vmul.f32 %v1317, %v1324
        %v1327 = vlaneseq
        %v1328 = vshrl.u32 %v1327, 7
        %v1329 = vsub.s32 0, %v1328
        %v1330 = vrot.slane %v1309, %v1329
        %v1332 = vmul.f32 %v1325, %v1330
        %v1334 = vlaneseq
        %v1335 = vshrl.u32 %v1334, 7
        %v1336 = vsub.s32 0, %v1335
        %v1337 = vrot.slane %v1310, %v1336
        %v1339 = vadd.f32 %v1332, %v1337
        %v1340 = vpack.c.bf16 %v1339, %v1339
        %v1341 = vld [vmem:[%s6] sm:$0xf]
        %v1342 = vld [vmem:[%s6 + $0x4] sm:$0xf]
        %v1343 = vld [vmem:[%s6 + $0x8] sm:$0xf]
        %v1344 = vld [vmem:[%s6 + $0xc] sm:$0xf]
        %v1345 = vld [vmem:[%s7] sm:$0x1]
        %v1347 = vlaneseq
        %v1348 = vshrl.u32 %v1347, 7
        %v1349 = vsub.s32 0, %v1348
        %v1350 = vrot.slane %v1345, %v1349
        %v1356 = vunpack.c.l.b16 %v1341
        %v1357 = vunpack.c.l.b16 %v1342
        %v1358 = vunpack.c.l.b16 %v1343
        %v1359 = vunpack.c.l.b16 %v1344
        %v1360 = vpack.c.b16 %v1357, %v1356
        %v1361 = vpack.c.b16 %v1359, %v1358
        %v1365 = vsel %vm727, %v1340, 0
        %1367 = vmatprep.subr.bf16.mxu0 0
        %1368 = vmatpush1.bf16.msra.mxu0 %v1360
        %1369 = vmatprep.subr.bf16.mxu0 0
        %1370 = vmatpush1.bf16.msra.mxu0 %v1361
        %1371 = vmatprep.subr.bf16.mxu0 0
        %1372 = vmatpush1.bf16.msra.mxu0 0
        %1373 = vmatprep.subr.bf16.mxu0 0
        %1374 = vmatpush1.bf16.msra.mxu0 0
        %1375 = vmatprep.subr.bf16.mxu0 0
        %1376 = vmatpush1.bf16.msra.mxu0 0
        %1377 = vmatprep.subr.bf16.mxu0 0
        %1378 = vmatpush1.bf16.msra.mxu0 0
        %1379 = vmatprep.subr.bf16.mxu0 0
        %1380 = vmatpush1.bf16.msra.mxu0 0
        %1381 = vmatprep.subr.bf16.mxu0 0
        %1382 = vmatpush1.bf16.msra.mxu0 0
        %1383 = vmatprep.subr.bf16.mxu0 0
        %1384 = vmatpush1.bf16.msra.mxu0 0
        %1385 = vmatprep.subr.bf16.mxu0 0
        %1386 = vmatpush1.bf16.msra.mxu0 0
        %1387 = vmatprep.subr.bf16.mxu0 0
        %1388 = vmatpush1.bf16.msra.mxu0 0
        %1389 = vmatprep.subr.bf16.mxu0 0
        %1390 = vmatpush1.bf16.msra.mxu0 0
        %1391 = vmatprep.subr.bf16.mxu0 0
        %1392 = vmatpush1.bf16.msra.mxu0 0
        %1393 = vmatprep.subr.bf16.mxu0 0
        %1394 = vmatpush1.bf16.msra.mxu0 0
        %1395 = vmatprep.subr.bf16.mxu0 0
        %1396 = vmatpush1.bf16.msra.mxu0 0
        %1397 = vmatprep.subr.bf16.mxu0 0
        %1398 = vmatpush1.bf16.msra.mxu0 0
        %1399 = vmatprep.mubr.bf16.mxu0 0
        %1400 = vmatmul.mubr.bf16.gmra.mrb[0].mxu0 %v1365
        %v1401 = vpop.f32.mrb[0].mxu0
        %v1402 = vadd.f32 %v1350, %v1401
        %v1403 = vpop.f32.mrb[0].mxu0
        %v1404 = vpop.f32.mrb[0].mxu0
        %v1405 = vpop.f32.mrb[0].mxu0
        %1406 = vdwg.mxu0
        %v1407 = vpack.c.bf16 %v702, %v701
        %v1408 = vld [vmem:[%s8] sm:$0xf]
        %v1409 = vld [vmem:[%s8 + $0x4] sm:$0xf]
        %v1410 = vld [vmem:[%s8 + $0x8] sm:$0xf]
        %v1411 = vld [vmem:[%s8 + $0xc] sm:$0xf]
        %v1412 = vld [vmem:[%s9] sm:$0x1]
        %v1414 = vlaneseq
        %v1415 = vshrl.u32 %v1414, 7
        %v1416 = vsub.s32 0, %v1415
        %v1417 = vrot.slane %v1412, %v1416
        %v1423 = vunpack.c.l.b16 %v1408
        %v1424 = vunpack.c.l.b16 %v1409
        %v1425 = vunpack.c.l.b16 %v1410
        %v1426 = vunpack.c.l.b16 %v1411
        %v1427 = vpack.c.b16 %v1424, %v1423
        %v1428 = vpack.c.b16 %v1426, %v1425
        %v1432 = vsel %vm727, %v1407, 0
        %1434 = vmatprep.subr.bf16.mxu0 0
        %1435 = vmatpush1.bf16.msra.mxu0 %v1427
        %1436 = vmatprep.subr.bf16.mxu0 0
        %1437 = vmatpush1.bf16.msra.mxu0 %v1428
        %1438 = vmatprep.subr.bf16.mxu0 0
        %1439 = vmatpush1.bf16.msra.mxu0 0
        %1440 = vmatprep.subr.bf16.mxu0 0
        %1441 = vmatpush1.bf16.msra.mxu0 0
        %1442 = vmatprep.subr.bf16.mxu0 0
        %1443 = vmatpush1.bf16.msra.mxu0 0
        %1444 = vmatprep.subr.bf16.mxu0 0
        %1445 = vmatpush1.bf16.msra.mxu0 0
        %1446 = vmatprep.subr.bf16.mxu0 0
        %1447 = vmatpush1.bf16.msra.mxu0 0
        %1448 = vmatprep.subr.bf16.mxu0 0
        %1449 = vmatpush1.bf16.msra.mxu0 0
        %1450 = vmatprep.subr.bf16.mxu0 0
        %1451 = vmatpush1.bf16.msra.mxu0 0
        %1452 = vmatprep.subr.bf16.mxu0 0
        %1453 = vmatpush1.bf16.msra.mxu0 0
        %1454 = vmatprep.subr.bf16.mxu0 0
        %1455 = vmatpush1.bf16.msra.mxu0 0
        %1456 = vmatprep.subr.bf16.mxu0 0
        %1457 = vmatpush1.bf16.msra.mxu0 0
        %1458 = vmatprep.subr.bf16.mxu0 0
        %1459 = vmatpush1.bf16.msra.mxu0 0
        %1460 = vmatprep.subr.bf16.mxu0 0
        %1461 = vmatpush1.bf16.msra.mxu0 0
        %1462 = vmatprep.subr.bf16.mxu0 0
        %1463 = vmatpush1.bf16.msra.mxu0 0
        %1464 = vmatprep.subr.bf16.mxu0 0
        %1465 = vmatpush1.bf16.msra.mxu0 0
        %1466 = vmatprep.mubr.bf16.mxu0 0
        %1467 = vmatmul.mubr.bf16.gmra.mrb[0].mxu0 %v1432
        %v1468 = vpop.f32.mrb[0].mxu0
        %v1469 = vadd.f32 %v1417, %v1468
        %v1470 = vpop.f32.mrb[0].mxu0
        %v1471 = vpop.f32.mrb[0].mxu0
        %v1472 = vadd.f32 %v1417, %v1471
        %v1473 = vpop.f32.mrb[0].mxu0
        %1474 = vdwg.mxu0
        %v1475 = vmul.f32 %v1402, 0.35355338
        %v1476 = vpack.c.bf16 %v1475, %v1475
        %v1477 = vpack.c.bf16 %v1472, %v1469
        %v1479 = vsel %vm782, %v1476, 0
        %v1482 = vsel %vm782, %v1477, 0
        %1484 = vmatprep.subr.bf16.mxu0 0
        %1485 = vmatpush1.bf16.xpose.msra.mxu0 %v1482
        %1486 = vmatprep.subr.bf16.mxu0 0
        %1487 = vmatpush1.bf16.xpose.msra.mxu0 0
        %1488 = vmatprep.subr.bf16.mxu0 0
        %1489 = vmatpush1.bf16.xpose.msra.mxu0 0
        %1490 = vmatprep.subr.bf16.mxu0 0
        %1491 = vmatpush1.bf16.xpose.msra.mxu0 0
        %1492 = vmatprep.subr.bf16.mxu0 0
        %1493 = vmatpush1.bf16.xpose.msra.mxu0 0
        %1494 = vmatprep.subr.bf16.mxu0 0
        %1495 = vmatpush1.bf16.xpose.msra.mxu0 0
        %1496 = vmatprep.subr.bf16.mxu0 0
        %1497 = vmatpush1.bf16.xpose.msra.mxu0 0
        %1498 = vmatprep.subr.bf16.mxu0 0
        %1499 = vmatpush1.bf16.xpose.msra.mxu0 0
        %1500 = vmatprep.subr.bf16.mxu0 0
        %1501 = vmatpush1.bf16.xpose.msra.mxu0 0
        %1502 = vmatprep.subr.bf16.mxu0 0
        %1503 = vmatpush1.bf16.xpose.msra.mxu0 0
        %1504 = vmatprep.subr.bf16.mxu0 0
        %1505 = vmatpush1.bf16.xpose.msra.mxu0 0
        %1506 = vmatprep.subr.bf16.mxu0 0
        %1507 = vmatpush1.bf16.xpose.msra.mxu0 0
        %1508 = vmatprep.subr.bf16.mxu0 0
        %1509 = vmatpush1.bf16.xpose.msra.mxu0 0
        %1510 = vmatprep.subr.bf16.mxu0 0
        %1511 = vmatpush1.bf16.xpose.msra.mxu0 0
        %1512 = vmatprep.subr.bf16.mxu0 0
        %1513 = vmatpush1.bf16.xpose.msra.mxu0 0
        %1514 = vmatprep.subr.bf16.mxu0 0
        %1515 = vmatpush1.bf16.xpose.msra.mxu0 0
        %1516 = vmatprep.mubr.bf16.mxu0 0
        %1517 = vmatmul.mubr.bf16.gmra.mrb[0].mxu0 %v1479
        %v1518 = vpop.f32.mrb[0].mxu0
        %v1519 = vadd.f32 0.0, %v1518
        %v1520 = vpop.f32.mrb[0].mxu0
        %v1521 = vpop.f32.mrb[0].mxu0
        %v1522 = vpop.f32.mrb[0].mxu0
        %1523 = vdwg.mxu0
        %vm1524 = vcmask 97280
        %v1525 = vsel %vm1524, %v1519, -inf
        %1526 = vmax.xlane.f32.xlu0 %v1525
        %v1527 = vpop.xlane.xlu0 %1526
        %v1528 = vsub.f32 %v1519, %v1527
        %v1529 = vmul.f32 %v1528, 1.442695
        %v1530 = vpow.pop %v1529
        %v1531 = vsel %vm1524, %v1530, 0.0
        %1532 = vadd.xlane.f32.xlu0 %v1531
        %v1533 = vpop.xlane.xlu0 %1532
        %v1534 = vrcp.pop %v1533
        %v1535 = vmul.f32 %v1530, %v1534
        %v1536 = vpack.c.bf16 %v1535, %v1535
        %1538 = vrot.lane.b32.xlu0 %v1477, 96
        %v1539 = vpop.permute.xlu0 %1538
        %v1541 = vsel %vm1524, %v1536, 0
        %vm1543 = vcmask 1045504
        %v1545 = vsel %vm1543, %v1539, 0
        %1547 = vmatprep.subr.bf16.mxu0 0
        %1548 = vmatpush1.bf16.msra.mxu0 %v1545
        %1549 = vmatprep.subr.bf16.mxu0 0
        %1550 = vmatpush1.bf16.msra.mxu0 0
        %1551 = vmatprep.subr.bf16.mxu0 0
        %1552 = vmatpush1.bf16.msra.mxu0 0
        %1553 = vmatprep.subr.bf16.mxu0 0
        %1554 = vmatpush1.bf16.msra.mxu0 0
        %1555 = vmatprep.subr.bf16.mxu0 0
        %1556 = vmatpush1.bf16.msra.mxu0 0
        %1557 = vmatprep.subr.bf16.mxu0 0
        %1558 = vmatpush1.bf16.msra.mxu0 0
        %1559 = vmatprep.subr.bf16.mxu0 0
        %1560 = vmatpush1.bf16.msra.mxu0 0
        %1561 = vmatprep.subr.bf16.mxu0 0
        %1562 = vmatpush1.bf16.msra.mxu0 0
        %1563 = vmatprep.subr.bf16.mxu0 0
        %1564 = vmatpush1.bf16.msra.mxu0 0
        %1565 = vmatprep.subr.bf16.mxu0 0
        %1566 = vmatpush1.bf16.msra.mxu0 0
        %1567 = vmatprep.subr.bf16.mxu0 0
        %1568 = vmatpush1.bf16.msra.mxu0 0
        %1569 = vmatprep.subr.bf16.mxu0 0
        %1570 = vmatpush1.bf16.msra.mxu0 0
        %1571 = vmatprep.subr.bf16.mxu0 0
        %1572 = vmatpush1.bf16.msra.mxu0 0
        %1573 = vmatprep.subr.bf16.mxu0 0
        %1574 = vmatpush1.bf16.msra.mxu0 0
        %1575 = vmatprep.subr.bf16.mxu0 0
        %1576 = vmatpush1.bf16.msra.mxu0 0
        %1577 = vmatprep.subr.bf16.mxu0 0
        %1578 = vmatpush1.bf16.msra.mxu0 0
        %1579 = vmatprep.mubr.bf16.mxu0 0
        %1580 = vmatmul.mubr.bf16.gmra.mrb[0].mxu0 %v1541
        %v1581 = vpop.f32.mrb[0].mxu0
        %v1582 = vadd.f32 0.0, %v1581
        %v1583 = vpop.f32.mrb[0].mxu0
        %v1584 = vpop.f32.mrb[0].mxu0
        %v1585 = vpop.f32.mrb[0].mxu0
        %1586 = vdwg.mxu0
        %1588 = vrot.lane.b32.xlu0 %v1476, 120
        %v1589 = vpop.permute.xlu0 %1588
        %1590 = vrot.lane.b32.xlu0 %v1477, 120
        %v1591 = vpop.permute.xlu0 %1590
        %v1593 = vsel %vm782, %v1589, 0
        %v1596 = vsel %vm782, %v1591, 0
        %1598 = vmatprep.subr.bf16.mxu0 0
        %1599 = vmatpush1.bf16.xpose.msra.mxu0 %v1596
        %1600 = vmatprep.subr.bf16.mxu0 0
        %1601 = vmatpush1.bf16.xpose.msra.mxu0 0
        %1602 = vmatprep.subr.bf16.mxu0 0
        %1603 = vmatpush1.bf16.xpose.msra.mxu0 0
        %1604 = vmatprep.subr.bf16.mxu0 0
        %1605 = vmatpush1.bf16.xpose.msra.mxu0 0
        %1606 = vmatprep.subr.bf16.mxu0 0
        %1607 = vmatpush1.bf16.xpose.msra.mxu0 0
        %1608 = vmatprep.subr.bf16.mxu0 0
        %1609 = vmatpush1.bf16.xpose.msra.mxu0 0
        %1610 = vmatprep.subr.bf16.mxu0 0
        %1611 = vmatpush1.bf16.xpose.msra.mxu0 0
        %1612 = vmatprep.subr.bf16.mxu0 0
        %1613 = vmatpush1.bf16.xpose.msra.mxu0 0
        %1614 = vmatprep.subr.bf16.mxu0 0
        %1615 = vmatpush1.bf16.xpose.msra.mxu0 0
        %1616 = vmatprep.subr.bf16.mxu0 0
        %1617 = vmatpush1.bf16.xpose.msra.mxu0 0
        %1618 = vmatprep.subr.bf16.mxu0 0
        %1619 = vmatpush1.bf16.xpose.msra.mxu0 0
        %1620 = vmatprep.subr.bf16.mxu0 0
        %1621 = vmatpush1.bf16.xpose.msra.mxu0 0
        %1622 = vmatprep.subr.bf16.mxu0 0
        %1623 = vmatpush1.bf16.xpose.msra.mxu0 0
        %1624 = vmatprep.subr.bf16.mxu0 0
        %1625 = vmatpush1.bf16.xpose.msra.mxu0 0
        %1626 = vmatprep.subr.bf16.mxu0 0
        %1627 = vmatpush1.bf16.xpose.msra.mxu0 0
        %1628 = vmatprep.subr.bf16.mxu0 0
        %1629 = vmatpush1.bf16.xpose.msra.mxu0 0
        %1630 = vmatprep.mubr.bf16.mxu0 0
        %1631 = vmatmul.mubr.bf16.gmra.mrb[0].mxu0 %v1593
        %v1632 = vpop.f32.mrb[0].mxu0
        %v1633 = vadd.f32 0.0, %v1632
        %v1634 = vpop.f32.mrb[0].mxu0
        %v1635 = vpop.f32.mrb[0].mxu0
        %v1636 = vpop.f32.mrb[0].mxu0
        %1637 = vdwg.mxu0
        %v1638 = vsel %vm1524, %v1633, -inf
        %1639 = vmax.xlane.f32.xlu0 %v1638
        %v1640 = vpop.xlane.xlu0 %1639
        %v1641 = vsub.f32 %v1633, %v1640
        %v1642 = vmul.f32 %v1641, 1.442695
        %v1643 = vpow.pop %v1642
        %v1644 = vsel %vm1524, %v1643, 0.0
        %1645 = vadd.xlane.f32.xlu0 %v1644
        %v1646 = vpop.xlane.xlu0 %1645
        %v1647 = vrcp.pop %v1646
        %v1648 = vmul.f32 %v1643, %v1647
        %v1649 = vpack.c.bf16 %v1648, %v1648
        %1650 = vrot.lane.b32.xlu0 %v1477, 88
        %v1651 = vpop.permute.xlu0 %1650
        %v1653 = vsel %vm1524, %v1649, 0
        %v1656 = vsel %vm1543, %v1651, 0
        %1658 = vmatprep.subr.bf16.mxu0 0
        %1659 = vmatpush1.bf16.msra.mxu0 %v1656
        %1660 = vmatprep.subr.bf16.mxu0 0
        %1661 = vmatpush1.bf16.msra.mxu0 0
        %1662 = vmatprep.subr.bf16.mxu0 0
        %1663 = vmatpush1.bf16.msra.mxu0 0
        %1664 = vmatprep.subr.bf16.mxu0 0
        %1665 = vmatpush1.bf16.msra.mxu0 0
        %1666 = vmatprep.subr.bf16.mxu0 0
        %1667 = vmatpush1.bf16.msra.mxu0 0
        %1668 = vmatprep.subr.bf16.mxu0 0
        %1669 = vmatpush1.bf16.msra.mxu0 0
        %1670 = vmatprep.subr.bf16.mxu0 0
        %1671 = vmatpush1.bf16.msra.mxu0 0
        %1672 = vmatprep.subr.bf16.mxu0 0
        %1673 = vmatpush1.bf16.msra.mxu0 0
        %1674 = vmatprep.subr.bf16.mxu0 0
        %1675 = vmatpush1.bf16.msra.mxu0 0
        %1676 = vmatprep.subr.bf16.mxu0 0
        %1677 = vmatpush1.bf16.msra.mxu0 0
        %1678 = vmatprep.subr.bf16.mxu0 0
        %1679 = vmatpush1.bf16.msra.mxu0 0
        %1680 = vmatprep.subr.bf16.mxu0 0
        %1681 = vmatpush1.bf16.msra.mxu0 0
        %1682 = vmatprep.subr.bf16.mxu0 0
        %1683 = vmatpush1.bf16.msra.mxu0 0
        %1684 = vmatprep.subr.bf16.mxu0 0
        %1685 = vmatpush1.bf16.msra.mxu0 0
        %1686 = vmatprep.subr.bf16.mxu0 0
        %1687 = vmatpush1.bf16.msra.mxu0 0
        %1688 = vmatprep.subr.bf16.mxu0 0
        %1689 = vmatpush1.bf16.msra.mxu0 0
        %1690 = vmatprep.mubr.bf16.mxu0 0
        %1691 = vmatmul.mubr.bf16.gmra.mrb[0].mxu0 %v1653
        %v1692 = vpop.f32.mrb[0].mxu0
        %v1693 = vadd.f32 0.0, %v1692
        %v1694 = vpop.f32.mrb[0].mxu0
        %v1695 = vpop.f32.mrb[0].mxu0
        %v1696 = vpop.f32.mrb[0].mxu0
        %1697 = vdwg.mxu0
        %1698 = vrot.lane.b32.xlu0 %v1476, 112
        %v1699 = vpop.permute.xlu0 %1698
        %1700 = vrot.lane.b32.xlu0 %v1477, 112
        %v1701 = vpop.permute.xlu0 %1700
        %v1703 = vsel %vm782, %v1699, 0
        %v1706 = vsel %vm782, %v1701, 0
        %1708 = vmatprep.subr.bf16.mxu0 0
        %1709 = vmatpush1.bf16.xpose.msra.mxu0 %v1706
        %1710 = vmatprep.subr.bf16.mxu0 0
        %1711 = vmatpush1.bf16.xpose.msra.mxu0 0
        %1712 = vmatprep.subr.bf16.mxu0 0
        %1713 = vmatpush1.bf16.xpose.msra.mxu0 0
        %1714 = vmatprep.subr.bf16.mxu0 0
        %1715 = vmatpush1.bf16.xpose.msra.mxu0 0
        %1716 = vmatprep.subr.bf16.mxu0 0
        %1717 = vmatpush1.bf16.xpose.msra.mxu0 0
        %1718 = vmatprep.subr.bf16.mxu0 0
        %1719 = vmatpush1.bf16.xpose.msra.mxu0 0
        %1720 = vmatprep.subr.bf16.mxu0 0
        %1721 = vmatpush1.bf16.xpose.msra.mxu0 0
        %1722 = vmatprep.subr.bf16.mxu0 0
        %1723 = vmatpush1.bf16.xpose.msra.mxu0 0
        %1724 = vmatprep.subr.bf16.mxu0 0
        %1725 = vmatpush1.bf16.xpose.msra.mxu0 0
        %1726 = vmatprep.subr.bf16.mxu0 0
        %1727 = vmatpush1.bf16.xpose.msra.mxu0 0
        %1728 = vmatprep.subr.bf16.mxu0 0
        %1729 = vmatpush1.bf16.xpose.msra.mxu0 0
        %1730 = vmatprep.subr.bf16.mxu0 0
        %1731 = vmatpush1.bf16.xpose.msra.mxu0 0
        %1732 = vmatprep.subr.bf16.mxu0 0
        %1733 = vmatpush1.bf16.xpose.msra.mxu0 0
        %1734 = vmatprep.subr.bf16.mxu0 0
        %1735 = vmatpush1.bf16.xpose.msra.mxu0 0
        %1736 = vmatprep.subr.bf16.mxu0 0
        %1737 = vmatpush1.bf16.xpose.msra.mxu0 0
        %1738 = vmatprep.subr.bf16.mxu0 0
        %1739 = vmatpush1.bf16.xpose.msra.mxu0 0
        %1740 = vmatprep.mubr.bf16.mxu0 0
        %1741 = vmatmul.mubr.bf16.gmra.mrb[0].mxu0 %v1703
        %v1742 = vpop.f32.mrb[0].mxu0
        %v1743 = vadd.f32 0.0, %v1742
        %v1744 = vpop.f32.mrb[0].mxu0
        %v1745 = vpop.f32.mrb[0].mxu0
        %v1746 = vpop.f32.mrb[0].mxu0
        %1747 = vdwg.mxu0
        %v1748 = vsel %vm1524, %v1743, -inf
        %1749 = vmax.xlane.f32.xlu0 %v1748
        %v1750 = vpop.xlane.xlu0 %1749
        %v1751 = vsub.f32 %v1743, %v1750
        %v1752 = vmul.f32 %v1751, 1.442695
        %v1753 = vpow.pop %v1752
        %v1754 = vsel %vm1524, %v1753, 0.0
        %1755 = vadd.xlane.f32.xlu0 %v1754
        %v1756 = vpop.xlane.xlu0 %1755
        %v1757 = vrcp.pop %v1756
        %v1758 = vmul.f32 %v1753, %v1757
        %v1759 = vpack.c.bf16 %v1758, %v1758
        %1760 = vrot.lane.b32.xlu0 %v1477, 80
        %v1761 = vpop.permute.xlu0 %1760
        %v1763 = vsel %vm1524, %v1759, 0
        %v1766 = vsel %vm1543, %v1761, 0
        %1768 = vmatprep.subr.bf16.mxu0 0
        %1769 = vmatpush1.bf16.msra.mxu0 %v1766
        %1770 = vmatprep.subr.bf16.mxu0 0
        %1771 = vmatpush1.bf16.msra.mxu0 0
        %1772 = vmatprep.subr.bf16.mxu0 0
        %1773 = vmatpush1.bf16.msra.mxu0 0
        %1774 = vmatprep.subr.bf16.mxu0 0
        %1775 = vmatpush1.bf16.msra.mxu0 0
        %1776 = vmatprep.subr.bf16.mxu0 0
        %1777 = vmatpush1.bf16.msra.mxu0 0
        %1778 = vmatprep.subr.bf16.mxu0 0
        %1779 = vmatpush1.bf16.msra.mxu0 0
        %1780 = vmatprep.subr.bf16.mxu0 0
        %1781 = vmatpush1.bf16.msra.mxu0 0
        %1782 = vmatprep.subr.bf16.mxu0 0
        %1783 = vmatpush1.bf16.msra.mxu0 0
        %1784 = vmatprep.subr.bf16.mxu0 0
        %1785 = vmatpush1.bf16.msra.mxu0 0
        %1786 = vmatprep.subr.bf16.mxu0 0
        %1787 = vmatpush1.bf16.msra.mxu0 0
        %1788 = vmatprep.subr.bf16.mxu0 0
        %1789 = vmatpush1.bf16.msra.mxu0 0
        %1790 = vmatprep.subr.bf16.mxu0 0
        %1791 = vmatpush1.bf16.msra.mxu0 0
        %1792 = vmatprep.subr.bf16.mxu0 0
        %1793 = vmatpush1.bf16.msra.mxu0 0
        %1794 = vmatprep.subr.bf16.mxu0 0
        %1795 = vmatpush1.bf16.msra.mxu0 0
        %1796 = vmatprep.subr.bf16.mxu0 0
        %1797 = vmatpush1.bf16.msra.mxu0 0
        %1798 = vmatprep.subr.bf16.mxu0 0
        %1799 = vmatpush1.bf16.msra.mxu0 0
        %1800 = vmatprep.mubr.bf16.mxu0 0
        %1801 = vmatmul.mubr.bf16.gmra.mrb[0].mxu0 %v1763
        %v1802 = vpop.f32.mrb[0].mxu0
        %v1803 = vadd.f32 0.0, %v1802
        %v1804 = vpop.f32.mrb[0].mxu0
        %v1805 = vpop.f32.mrb[0].mxu0
        %v1806 = vpop.f32.mrb[0].mxu0
        %1807 = vdwg.mxu0
        %1808 = vrot.lane.b32.xlu0 %v1476, 104
        %v1809 = vpop.permute.xlu0 %1808
        %1810 = vrot.lane.b32.xlu0 %v1477, 104
        %v1811 = vpop.permute.xlu0 %1810
        %v1813 = vsel %vm782, %v1809, 0
        %v1816 = vsel %vm782, %v1811, 0
        %1818 = vmatprep.subr.bf16.mxu0 0
        %1819 = vmatpush1.bf16.xpose.msra.mxu0 %v1816
        %1820 = vmatprep.subr.bf16.mxu0 0
        %1821 = vmatpush1.bf16.xpose.msra.mxu0 0
        %1822 = vmatprep.subr.bf16.mxu0 0
        %1823 = vmatpush1.bf16.xpose.msra.mxu0 0
        %1824 = vmatprep.subr.bf16.mxu0 0
        %1825 = vmatpush1.bf16.xpose.msra.mxu0 0
        %1826 = vmatprep.subr.bf16.mxu0 0
        %1827 = vmatpush1.bf16.xpose.msra.mxu0 0
        %1828 = vmatprep.subr.bf16.mxu0 0
        %1829 = vmatpush1.bf16.xpose.msra.mxu0 0
        %1830 = vmatprep.subr.bf16.mxu0 0
        %1831 = vmatpush1.bf16.xpose.msra.mxu0 0
        %1832 = vmatprep.subr.bf16.mxu0 0
        %1833 = vmatpush1.bf16.xpose.msra.mxu0 0
        %1834 = vmatprep.subr.bf16.mxu0 0
        %1835 = vmatpush1.bf16.xpose.msra.mxu0 0
        %1836 = vmatprep.subr.bf16.mxu0 0
        %1837 = vmatpush1.bf16.xpose.msra.mxu0 0
        %1838 = vmatprep.subr.bf16.mxu0 0
        %1839 = vmatpush1.bf16.xpose.msra.mxu0 0
        %1840 = vmatprep.subr.bf16.mxu0 0
        %1841 = vmatpush1.bf16.xpose.msra.mxu0 0
        %1842 = vmatprep.subr.bf16.mxu0 0
        %1843 = vmatpush1.bf16.xpose.msra.mxu0 0
        %1844 = vmatprep.subr.bf16.mxu0 0
        %1845 = vmatpush1.bf16.xpose.msra.mxu0 0
        %1846 = vmatprep.subr.bf16.mxu0 0
        %1847 = vmatpush1.bf16.xpose.msra.mxu0 0
        %1848 = vmatprep.subr.bf16.mxu0 0
        %1849 = vmatpush1.bf16.xpose.msra.mxu0 0
        %1850 = vmatprep.mubr.bf16.mxu0 0
        %1851 = vmatmul.mubr.bf16.gmra.mrb[0].mxu0 %v1813
        %v1852 = vpop.f32.mrb[0].mxu0
        %v1853 = vadd.f32 0.0, %v1852
        %v1854 = vpop.f32.mrb[0].mxu0
        %v1855 = vpop.f32.mrb[0].mxu0
        %v1856 = vpop.f32.mrb[0].mxu0
        %1857 = vdwg.mxu0
        %v1858 = vsel %vm1524, %v1853, -inf
        %1859 = vmax.xlane.f32.xlu0 %v1858
        %v1860 = vpop.xlane.xlu0 %1859
        %v1861 = vsub.f32 %v1853, %v1860
        %v1862 = vmul.f32 %v1861, 1.442695
        %v1863 = vpow.pop %v1862
        %v1864 = vsel %vm1524, %v1863, 0.0
        %1865 = vadd.xlane.f32.xlu0 %v1864
        %v1866 = vpop.xlane.xlu0 %1865
        %v1867 = vrcp.pop %v1866
        %v1868 = vmul.f32 %v1863, %v1867
        %v1869 = vpack.c.bf16 %v1868, %v1868
        %1870 = vrot.lane.b32.xlu0 %v1477, 72
        %v1871 = vpop.permute.xlu0 %1870
        %v1873 = vsel %vm1524, %v1869, 0
        %v1876 = vsel %vm1543, %v1871, 0
        %1878 = vmatprep.subr.bf16.mxu0 0
        %1879 = vmatpush1.bf16.msra.mxu0 %v1876
        %1880 = vmatprep.subr.bf16.mxu0 0
        %1881 = vmatpush1.bf16.msra.mxu0 0
        %1882 = vmatprep.subr.bf16.mxu0 0
        %1883 = vmatpush1.bf16.msra.mxu0 0
        %1884 = vmatprep.subr.bf16.mxu0 0
        %1885 = vmatpush1.bf16.msra.mxu0 0
        %1886 = vmatprep.subr.bf16.mxu0 0
        %1887 = vmatpush1.bf16.msra.mxu0 0
        %1888 = vmatprep.subr.bf16.mxu0 0
        %1889 = vmatpush1.bf16.msra.mxu0 0
        %1890 = vmatprep.subr.bf16.mxu0 0
        %1891 = vmatpush1.bf16.msra.mxu0 0
        %1892 = vmatprep.subr.bf16.mxu0 0
        %1893 = vmatpush1.bf16.msra.mxu0 0
        %1894 = vmatprep.subr.bf16.mxu0 0
        %1895 = vmatpush1.bf16.msra.mxu0 0
        %1896 = vmatprep.subr.bf16.mxu0 0
        %1897 = vmatpush1.bf16.msra.mxu0 0
        %1898 = vmatprep.subr.bf16.mxu0 0
        %1899 = vmatpush1.bf16.msra.mxu0 0
        %1900 = vmatprep.subr.bf16.mxu0 0
        %1901 = vmatpush1.bf16.msra.mxu0 0
        %1902 = vmatprep.subr.bf16.mxu0 0
        %1903 = vmatpush1.bf16.msra.mxu0 0
        %1904 = vmatprep.subr.bf16.mxu0 0
        %1905 = vmatpush1.bf16.msra.mxu0 0
        %1906 = vmatprep.subr.bf16.mxu0 0
        %1907 = vmatpush1.bf16.msra.mxu0 0
        %1908 = vmatprep.subr.bf16.mxu0 0
        %1909 = vmatpush1.bf16.msra.mxu0 0
        %1910 = vmatprep.mubr.bf16.mxu0 0
        %1911 = vmatmul.mubr.bf16.gmra.mrb[0].mxu0 %v1873
        %v1912 = vpop.f32.mrb[0].mxu0
        %v1913 = vadd.f32 0.0, %v1912
        %v1914 = vpop.f32.mrb[0].mxu0
        %v1915 = vpop.f32.mrb[0].mxu0
        %v1916 = vpop.f32.mrb[0].mxu0
        %1917 = vdwg.mxu0
        %1919 = vrot.lane.b32.xlu0 %v1693, 8
        %v1920 = vpop.permute.xlu0 %1919
        %1923 = vrot.lane.b32.xlu0 %v1803, 16
        %v1924 = vpop.permute.xlu0 %1923
        %1927 = vrot.lane.b32.xlu0 %v1913, 24
        %v1928 = vpop.permute.xlu0 %1927
        %v1930 = vsel %vm782, %v1582, %v1920
        %v1931 = vsel %vm1238, %v1930, %v1924
        %v1932 = vsel %vm1240, %v1931, %v1928
        %v1933 = vpack.c.bf16 %v1932, %v1932
        %v1934 = vld [vmem:[%s10] sm:$0xf]
        %v1935 = vld [vmem:[%s10 + $0x4] sm:$0xf]
        %v1936 = vld [vmem:[%s10 + $0x8] sm:$0xf]
        %v1937 = vld [vmem:[%s10 + $0xc] sm:$0xf]
        %v1938 = vld [vmem:[%s11] sm:$0x1]
        %v1940 = vlaneseq
        %v1941 = vshrl.u32 %v1940, 7
        %v1942 = vsub.s32 0, %v1941
        %v1943 = vrot.slane %v1938, %v1942
        %v1949 = vunpack.c.l.b16 %v1934
        %v1950 = vunpack.c.l.b16 %v1935
        %v1951 = vunpack.c.l.b16 %v1936
        %v1952 = vunpack.c.l.b16 %v1937
        %v1953 = vpack.c.b16 %v1950, %v1949
        %v1954 = vpack.c.b16 %v1952, %v1951
        %v1958 = vsel %vm727, %v1933, 0
        %1960 = vmatprep.subr.bf16.mxu0 0
        %1961 = vmatpush1.bf16.msra.mxu0 %v1953
        %1962 = vmatprep.subr.bf16.mxu0 0
        %1963 = vmatpush1.bf16.msra.mxu0 %v1954
        %1964 = vmatprep.subr.bf16.mxu0 0
        %1965 = vmatpush1.bf16.msra.mxu0 0
        %1966 = vmatprep.subr.bf16.mxu0 0
        %1967 = vmatpush1.bf16.msra.mxu0 0
        %1968 = vmatprep.subr.bf16.mxu0 0
        %1969 = vmatpush1.bf16.msra.mxu0 0
        %1970 = vmatprep.subr.bf16.mxu0 0
        %1971 = vmatpush1.bf16.msra.mxu0 0
        %1972 = vmatprep.subr.bf16.mxu0 0
        %1973 = vmatpush1.bf16.msra.mxu0 0
        %1974 = vmatprep.subr.bf16.mxu0 0
        %1975 = vmatpush1.bf16.msra.mxu0 0
        %1976 = vmatprep.subr.bf16.mxu0 0
        %1977 = vmatpush1.bf16.msra.mxu0 0
        %1978 = vmatprep.subr.bf16.mxu0 0
        %1979 = vmatpush1.bf16.msra.mxu0 0
        %1980 = vmatprep.subr.bf16.mxu0 0
        %1981 = vmatpush1.bf16.msra.mxu0 0
        %1982 = vmatprep.subr.bf16.mxu0 0
        %1983 = vmatpush1.bf16.msra.mxu0 0
        %1984 = vmatprep.subr.bf16.mxu0 0
        %1985 = vmatpush1.bf16.msra.mxu0 0
        %1986 = vmatprep.subr.bf16.mxu0 0
        %1987 = vmatpush1.bf16.msra.mxu0 0
        %1988 = vmatprep.subr.bf16.mxu0 0
        %1989 = vmatpush1.bf16.msra.mxu0 0
        %1990 = vmatprep.subr.bf16.mxu0 0
        %1991 = vmatpush1.bf16.msra.mxu0 0
        %1992 = vmatprep.mubr.bf16.mxu0 0
        %1993 = vmatmul.mubr.bf16.gmra.mrb[0].mxu0 %v1958
        %v1994 = vpop.f32.mrb[0].mxu0
        %v1995 = vadd.f32 %v1943, %v1994
        %v1996 = vpop.f32.mrb[0].mxu0
        %v1997 = vpop.f32.mrb[0].mxu0
        %v1998 = vpop.f32.mrb[0].mxu0
        %1999 = vdwg.mxu0
        %v2000 = vld [vmem:[%s18] sm:$0x1]
        %v2001 = vld [vmem:[%s19] sm:$0x1]
        %v2002 = vadd.f32 %v1339, %v1995
        %v2003 = vsel %vm727, %v2002, 0.0
        %2004 = vadd.xlane.f32.xlu0 %v2003
        %v2005 = vpop.xlane.xlu0 %2004
        %v2006 = vmul.f32 %v2005, %v1315
        %v2007 = vsub.f32 %v2002, %v2006
        %v2008 = vmul.f32 %v2007, %v2007
        %v2009 = vsel %vm727, %v2008, 0.0
        %2010 = vadd.xlane.f32.xlu0 %v2009
        %v2011 = vpop.xlane.xlu0 %2010
        %v2012 = vmul.f32 %v2011, %v1315
        %v2013 = vadd.f32 %v2012, 1e-05
        %v2014 = vrsqrt.pop %v2013
        %v2015 = vmul.f32 %v2007, %v2014
        %v2017 = vlaneseq
        %v2018 = vshrl.u32 %v2017, 7
        %v2019 = vsub.s32 0, %v2018
        %v2020 = vrot.slane %v2000, %v2019
        %v2022 = vmul.f32 %v2015, %v2020
        %v2024 = vlaneseq
        %v2025 = vshrl.u32 %v2024, 7
        %v2026 = vsub.s32 0, %v2025
        %v2027 = vrot.slane %v2001, %v2026
        %v2029 = vadd.f32 %v2022, %v2027
        %v2030 = vpack.c.bf16 %v2029, %v2029
        %v2031 = vld [vmem:[%s12] sm:$0xf]
        %v2032 = vld [vmem:[%s12 + $0x4] sm:$0xf]
        %v2033 = vld [vmem:[%s12 + $0x8] sm:$0xf]
        %v2034 = vld [vmem:[%s12 + $0xc] sm:$0xf]
        %v2035 = vld [vmem:[%s13] sm:$0x1]
        %v2037 = vlaneseq
        %v2038 = vshrl.u32 %v2037, 7
        %v2039 = vsub.s32 0, %v2038
        %v2040 = vrot.slane %v2035, %v2039
        %v2046 = vunpack.c.l.b16 %v2031
        %v2047 = vunpack.c.l.b16 %v2032
        %v2048 = vunpack.c.l.b16 %v2033
        %v2049 = vunpack.c.l.b16 %v2034
        %v2050 = vpack.c.b16 %v2047, %v2046
        %v2051 = vpack.c.b16 %v2049, %v2048
        %v2055 = vsel %vm727, %v2030, 0
        %2057 = vmatprep.subr.bf16.mxu0 0
        %2058 = vmatpush1.bf16.msra.mxu0 %v2050
        %2059 = vmatprep.subr.bf16.mxu0 0
        %2060 = vmatpush1.bf16.msra.mxu0 %v2051
        %2061 = vmatprep.subr.bf16.mxu0 0
        %2062 = vmatpush1.bf16.msra.mxu0 0
        %2063 = vmatprep.subr.bf16.mxu0 0
        %2064 = vmatpush1.bf16.msra.mxu0 0
        %2065 = vmatprep.subr.bf16.mxu0 0
        %2066 = vmatpush1.bf16.msra.mxu0 0
        %2067 = vmatprep.subr.bf16.mxu0 0
        %2068 = vmatpush1.bf16.msra.mxu0 0
        %2069 = vmatprep.subr.bf16.mxu0 0
        %2070 = vmatpush1.bf16.msra.mxu0 0
        %2071 = vmatprep.subr.bf16.mxu0 0
        %2072 = vmatpush1.bf16.msra.mxu0 0
        %2073 = vmatprep.subr.bf16.mxu0 0
        %2074 = vmatpush1.bf16.msra.mxu0 0
        %2075 = vmatprep.subr.bf16.mxu0 0
        %2076 = vmatpush1.bf16.msra.mxu0 0
        %2077 = vmatprep.subr.bf16.mxu0 0
        %2078 = vmatpush1.bf16.msra.mxu0 0
        %2079 = vmatprep.subr.bf16.mxu0 0
        %2080 = vmatpush1.bf16.msra.mxu0 0
        %2081 = vmatprep.subr.bf16.mxu0 0
        %2082 = vmatpush1.bf16.msra.mxu0 0
        %2083 = vmatprep.subr.bf16.mxu0 0
        %2084 = vmatpush1.bf16.msra.mxu0 0
        %2085 = vmatprep.subr.bf16.mxu0 0
        %2086 = vmatpush1.bf16.msra.mxu0 0
        %2087 = vmatprep.subr.bf16.mxu0 0
        %2088 = vmatpush1.bf16.msra.mxu0 0
        %2089 = vmatprep.mubr.bf16.mxu0 0
        %2090 = vmatmul.mubr.bf16.gmra.mrb[0].mxu0 %v2055
        %v2091 = vpop.f32.mrb[0].mxu0
        %v2092 = vadd.f32 %v2040, %v2091
        %v2093 = vpop.f32.mrb[0].mxu0
        %v2094 = vpop.f32.mrb[0].mxu0
        %v2095 = vpop.f32.mrb[0].mxu0
        %2096 = vdwg.mxu0
        %v2097 = vmax.f32 %v2092, 0.0
        %v2098 = vpack.c.bf16 %v2097, %v2097
        %v2099 = vld [vmem:[%s14] sm:$0xf]
        %v2100 = vld [vmem:[%s14 + $0x4] sm:$0xf]
        %v2101 = vld [vmem:[%s14 + $0x8] sm:$0xf]
        %v2102 = vld [vmem:[%s14 + $0xc] sm:$0xf]
        %v2103 = vld [vmem:[%s14 + $0x10] sm:$0xf]
        %v2104 = vld [vmem:[%s14 + $0x14] sm:$0xf]
        %v2105 = vld [vmem:[%s14 + $0x18] sm:$0xf]
        %v2106 = vld [vmem:[%s14 + $0x1c] sm:$0xf]
        %v2107 = vld [vmem:[%s14 + $0x20] sm:$0xf]
        %v2108 = vld [vmem:[%s14 + $0x24] sm:$0xf]
        %v2109 = vld [vmem:[%s14 + $0x28] sm:$0xf]
        %v2110 = vld [vmem:[%s14 + $0x2c] sm:$0xf]
        %v2111 = vld [vmem:[%s14 + $0x30] sm:$0xf]
        %v2112 = vld [vmem:[%s14 + $0x34] sm:$0xf]
        %v2113 = vld [vmem:[%s14 + $0x38] sm:$0xf]
        %v2114 = vld [vmem:[%s14 + $0x3c] sm:$0xf]
        %v2115 = vld [vmem:[%s15] sm:$0x1]
        %v2117 = vlaneseq
        %v2118 = vshrl.u32 %v2117, 7
        %v2119 = vsub.s32 0, %v2118
        %v2120 = vrot.slane %v2115, %v2119
        %v2138 = vunpack.c.l.b16 %v2099
        %v2139 = vunpack.c.l.b16 %v2100
        %v2140 = vunpack.c.l.b16 %v2101
        %v2141 = vunpack.c.l.b16 %v2102
        %v2142 = vunpack.c.l.b16 %v2103
        %v2143 = vunpack.c.l.b16 %v2104
        %v2144 = vunpack.c.l.b16 %v2105
        %v2145 = vunpack.c.l.b16 %v2106
        %v2146 = vunpack.c.l.b16 %v2107
        %v2147 = vunpack.c.l.b16 %v2108
        %v2148 = vunpack.c.l.b16 %v2109
        %v2149 = vunpack.c.l.b16 %v2110
        %v2150 = vunpack.c.l.b16 %v2111
        %v2151 = vunpack.c.l.b16 %v2112
        %v2152 = vunpack.c.l.b16 %v2113
        %v2153 = vunpack.c.l.b16 %v2114
        %v2154 = vpack.c.b16 %v2139, %v2138
        %v2155 = vpack.c.b16 %v2141, %v2140
        %v2156 = vpack.c.b16 %v2143, %v2142
        %v2157 = vpack.c.b16 %v2145, %v2144
        %v2158 = vpack.c.b16 %v2147, %v2146
        %v2159 = vpack.c.b16 %v2149, %v2148
        %v2160 = vpack.c.b16 %v2151, %v2150
        %v2161 = vpack.c.b16 %v2153, %v2152
        %2170 = vmatprep.subr.bf16.mxu0 0
        %2171 = vmatpush1.bf16.msra.mxu0 %v2154
        %2172 = vmatprep.subr.bf16.mxu0 0
        %2173 = vmatpush1.bf16.msra.mxu0 %v2155
        %2174 = vmatprep.subr.bf16.mxu0 0
        %2175 = vmatpush1.bf16.msra.mxu0 %v2156
        %2176 = vmatprep.subr.bf16.mxu0 0
        %2177 = vmatpush1.bf16.msra.mxu0 %v2157
        %2178 = vmatprep.subr.bf16.mxu0 0
        %2179 = vmatpush1.bf16.msra.mxu0 %v2158
        %2180 = vmatprep.subr.bf16.mxu0 0
        %2181 = vmatpush1.bf16.msra.mxu0 %v2159
        %2182 = vmatprep.subr.bf16.mxu0 0
        %2183 = vmatpush1.bf16.msra.mxu0 %v2160
        %2184 = vmatprep.subr.bf16.mxu0 0
        %2185 = vmatpush1.bf16.msra.mxu0 %v2161
        %2186 = vmatprep.subr.bf16.mxu0 0
        %2187 = vmatpush1.bf16.msra.mxu0 0
        %2188 = vmatprep.subr.bf16.mxu0 0
        %2189 = vmatpush1.bf16.msra.mxu0 0
        %2190 = vmatprep.subr.bf16.mxu0 0
        %2191 = vmatpush1.bf16.msra.mxu0 0
        %2192 = vmatprep.subr.bf16.mxu0 0
        %2193 = vmatpush1.bf16.msra.mxu0 0
        %2194 = vmatprep.subr.bf16.mxu0 0
        %2195 = vmatpush1.bf16.msra.mxu0 0
        %2196 = vmatprep.subr.bf16.mxu0 0
        %2197 = vmatpush1.bf16.msra.mxu0 0
        %2198 = vmatprep.subr.bf16.mxu0 0
        %2199 = vmatpush1.bf16.msra.mxu0 0
        %2200 = vmatprep.subr.bf16.mxu0 0
        %2201 = vmatpush1.bf16.msra.mxu0 0
        %2202 = vmatprep.mubr.bf16.mxu0 0
        %2203 = vmatmul.mubr.bf16.gmra.mrb[0].mxu0 %v2098
        %v2204 = vpop.f32.mrb[0].mxu0
        %v2205 = vadd.f32 %v2120, %v2204
        %v2206 = vpop.f32.mrb[0].mxu0
        %v2207 = vpop.f32.mrb[0].mxu0
        %v2208 = vpop.f32.mrb[0].mxu0
        %2209 = vdwg.mxu0
        %v2210 = vld [vmem:[%s20] sm:$0x1]
        %v2211 = vld [vmem:[%s21] sm:$0x1]
        %v2212 = vadd.f32 %v2029, %v2205
        %v2213 = vsel %vm727, %v2212, 0.0
        %2214 = vadd.xlane.f32.xlu0 %v2213
        %v2215 = vpop.xlane.xlu0 %2214
        %v2216 = vmul.f32 %v2215, %v1315
        %v2217 = vsub.f32 %v2212, %v2216
        %v2218 = vmul.f32 %v2217, %v2217
        %v2219 = vsel %vm727, %v2218, 0.0
        %2220 = vadd.xlane.f32.xlu0 %v2219
        %v2221 = vpop.xlane.xlu0 %2220
        %v2222 = vmul.f32 %v2221, %v1315
        %v2223 = vadd.f32 %v2222, 1e-05
        %v2224 = vrsqrt.pop %v2223
        %v2225 = vmul.f32 %v2217, %v2224
        %v2227 = vlaneseq
        %v2228 = vshrl.u32 %v2227, 7
        %v2229 = vsub.s32 0, %v2228
        %v2230 = vrot.slane %v2210, %v2229
        %v2232 = vmul.f32 %v2225, %v2230
        %v2234 = vlaneseq
        %v2235 = vshrl.u32 %v2234, 7
        %v2236 = vsub.s32 0, %v2235
        %v2237 = vrot.slane %v2211, %v2236
        %v2239 = vadd.f32 %v2232, %v2237
        %2240 = vst.msk [vmem:[%s689] sm:$0xff] %vm727, %v2239
        %s2241 = sand.u32 %s516, 1
        %s2242 = scalar_lea.sflag [#allocation3], %s2241
        %s2243 = sand.u32 %s516, 1
        %s2244 = smul.addr %s2243, 8
        %s2245 = scalar_lea.vmem [#allocation2], %s2244
        // Predicated region
        $region109: #{tpu_custom_call.1} parent=107 // pred_check
          %p2246 = pneg %p526
        $region110: #{tpu_custom_call.1} parent=107 // pred_check_branch
          %2248 = sbr.rel (%p2246) target = $region112
        $region111: #{tpu_custom_call.1} parent=107 // pred_region
          %s2250 = ssub.s32 128, 128
          %2251 = vsyncadd %s2242, %s2250
          %s2252 = smul.addr %s36, 128
          %s2253 = scalar_lea.hbm %s22, %s2252
          %s2255 = sshll.u32 %s2245, 4
          %s2256 = int_to_ptr.vmem [resolvable:$true] %s2255
          %2258 = dma.vmem_to_hbm [thread:$0]  %s2256, 128, %s2253, %s2242
        $region112: #{tpu_custom_call.1} parent=107 // pred_fallthru
          _
      $region108: #{tpu_custom_call.1} parent=5 // pred_fallthru
        _
      %p2259 = scmp.le.s32.totalorder 2, %s31
      // Predicated region
      $region113: #{tpu_custom_call.1} parent=5 // pred_check
        %p2260 = pneg %p2259
      $region114: #{tpu_custom_call.1} parent=5 // pred_check_branch
        %2262 = sbr.rel (%p2260) target = $region116
      $region115: #{tpu_custom_call.1} parent=5 // pred_region
        %s2263 = ssub.s32 %s31, 2
        // Predicated region
        $region117: #{tpu_custom_call.1} parent=115 // pred_check
          %p2264 = pneg %p532
        $region118: #{tpu_custom_call.1} parent=115 // pred_check_branch
          %2266 = sbr.rel (%p2264) target = $region120
        $region119: #{tpu_custom_call.1} parent=115 // pred_region
          %s2267 = sand.u32 %s517, 1
          %s2268 = scalar_lea.sflag [#allocation3], %s2267
          %s2269 = sand.u32 %s517, 1
          %s2270 = smul.addr %s2269, 8
          %s2271 = scalar_lea.vmem [#allocation2], %s2270
          %2272 = dma.done %s2268, 128
        $region120: #{tpu_custom_call.1} parent=115 // pred_fallthru
          _
      $region116: #{tpu_custom_call.1} parent=5 // pred_fallthru
        _
    $region6: #{tpu_custom_call.1} parent=1 // loop_footer
      %s35 = sadd.s32 1, %s31
    $region7: #{tpu_custom_call.1} parent=1 // loop_footer_branch
      %30 = sbr.rel target = $region3
    $region8: #{tpu_custom_call.1} parent=1 // loop_exit
      _
    %2273 = vsyncpa [#allocation3], 1
    %s2274 = scalar_lea.sflag [#allocation3], 1
    %2275 = vsyncpa %s2274, 1

</llo_original>
